<compile_context>
chip_gen: v5e
topology: v5e:2x2
jax: 0.10.0
libtpu: 0.0.40
codegen_flags: <defaults>
</compile_context>

<pallas_src>
import functools
from math import ceil

import jax
import jax.numpy as jnp
from jax import lax
from jax.experimental import pallas as pl
from jax.experimental.pallas import tpu as pltpu

BN_EPS = 1e-5


# ----------------------------------------------------------------------------
# In-kernel helpers: selection-matrix based shifted/strided row gather and the
# fused conv + folded-BN + residual + ReLU epilogue.
# ----------------------------------------------------------------------------
def _selection_matrix(mcache, B, Lout, Lin, stride, offset):
    """(B*Lout, B*Lin) 0/1 matrix S with S[b*Lout+i, b*Lin+j] = 1 iff
    j == i*stride + offset within the same sample b.  Rows whose source index
    falls outside [0, Lin) are all-zero, which implements zero padding."""
    key = (B, Lout, Lin, stride, offset)
    if key not in mcache:
        rows, cols = B * Lout, B * Lin
        r = lax.broadcasted_iota(jnp.int32, (rows, cols), 0)
        c = lax.broadcasted_iota(jnp.int32, (rows, cols), 1)
        if B == 1:
            m = c == r * stride + offset
        else:
            br = r // Lout
            i = r - br * Lout
            bc = c // Lin
            j = c - bc * Lin
            m = (br == bc) & (j == i * stride + offset)
        mcache[key] = m.astype(jnp.float32)
    return mcache[key]


def _select(a, mcache, *, B, Lin, Lout, stride, offset):
    """Gather rows x[b, i*stride + offset] (zero outside [0, Lin)) from the
    flattened activation a: (B*Lin, C) -> (B*Lout, C)."""
    if stride == 1 and offset == 0 and Lin == Lout:
        return a
    S = _selection_matrix(mcache, B, Lout, Lin, stride, offset)
    return jnp.dot(S, a, preferred_element_type=jnp.float32)


def _conv_bn_act(a, w_taps, shift, mcache, *, B, Lin, Lout, stride, dilation,
                 pad_l, relu, res=None):
    """Conv1d (sum of shifted matmuls, BN scale folded into w) + shift
    (BN beta/mean + conv bias) + optional residual add + optional ReLU."""
    acc = None
    for t, wt in enumerate(w_taps):
        xt = _select(a, mcache, B=B, Lin=Lin, Lout=Lout, stride=stride,
                     offset=t * dilation - pad_l)
        contrib = jnp.dot(xt, wt, preferred_element_type=jnp.float32)
        acc = contrib if acc is None else acc + contrib
    y = acc + shift
    if res is not None:
        y = y + res
    if relu:
        y = jnp.maximum(y, 0.0)
    return y


# ----------------------------------------------------------------------------
# The single fused TempNet kernel (per grid step: one batch chunk of B samples,
# flattened into the matmul M dimension).
# ----------------------------------------------------------------------------
def _tempnet_kernel(x_ref, *refs, cfg, B, L_in):
    o_ref = refs[-1]
    p_refs = refs[:-1]
    a = x_ref[0].astype(jnp.float32)            # (B*L_in, C_in)
    mcache = {}                                 # reused selection matrices
    L = L_in
    p = 0
    for blk in cfg:
        w0_ref, s0_ref, w1_ref, s1_ref, wd_ref, sd_ref = p_refs[p:p + 6]
        p += 6
        k0, k1, d1 = blk["k0"], blk["k1"], blk["dil1"]
        w0 = [w0_ref[t] for t in range(k0)]
        w1 = [w1_ref[t] for t in range(k1)]
        wd = [wd_ref[...]]
        s0, s1, sd = s0_ref[...], s1_ref[...], sd_ref[...]

        if blk["kind"] == "block2":
            Lout = (L - k0) // 2 + 1
            # x1  = relu(bn0(tcn0_stride2(a)))
            x1 = _conv_bn_act(a, w0, s0, mcache, B=B, Lin=L, Lout=Lout,
                              stride=2, dilation=1, pad_l=0, relu=True)
            # res = relu(bn(downsample_stride2(a)))
            res = _conv_bn_act(a, wd, sd, mcache, B=B, Lin=L, Lout=Lout,
                               stride=2, dilation=1, pad_l=0, relu=True)
        else:  # block1: 'same'-padded dilated convs
            d0 = blk["dil0"]
            Lout = L
            x1 = _conv_bn_act(a, w0, s0, mcache, B=B, Lin=L, Lout=L, stride=1,
                              dilation=d0, pad_l=d0 * (k0 - 1) // 2, relu=True)
            res = _conv_bn_act(a, wd, sd, mcache, B=B, Lin=L, Lout=L, stride=1,
                               dilation=1, pad_l=0, relu=True)
        # out = relu(bn1(tcn1(x1)) + res)   (residual add + final ReLU fused)
        a = _conv_bn_act(x1, w1, s1, mcache, B=B, Lin=Lout, Lout=Lout,
                         stride=1, dilation=d1, pad_l=d1 * (k1 - 1) // 2,
                         relu=True, res=res)
        L = Lout
    o_ref[0] = a.astype(o_ref.dtype)


def _const_spec(shape):
    nd = len(shape)
    return pl.BlockSpec(shape, lambda g, _nd=nd: (0,) * _nd)


def tempnet_pallas(x_ncl, blocks):
    """x_ncl: (N, C_in, L_in) like the PyTorch Conv1d input."""
    N, C_in, L_in = x_ncl.shape
    x = jnp.transpose(x_ncl, (0, 2, 1)).astype(jnp.float32)   # NCL -> NLC

    # Split batch across the grid (both TCs on v7x); each step flattens its
    # chunk of B samples into the matmul M dimension.
    num_steps = 2 if (N % 2 == 0 and N >= 2) else 1
    B = N // num_steps
    x = x.reshape(num_steps, B * L_in, C_in)

    params, cfg = [], []
    flops = 0
    L = L_in
    for blk in blocks:
        t0, t1, dn = blk["tcn0"], blk["tcn1"], blk["down"]

        def fold(u):
            w = (u["w"] * u["scale"][None, None, :]).astype(jnp.float32)
            s = u["shift"].reshape(1, -1).astype(jnp.float32)
            return w, s

        w0, s0 = fold(t0)
        w1, s1 = fold(t1)
        wd, sd = fold(dn)
        params += [w0, s0, w1, s1, wd[0], sd]      # downsample k=1 -> 2-D
        k0, k1 = w0.shape[0], w1.shape[0]
        cfg.append(dict(kind=blk["kind"], k0=k0, k1=k1,
                        dil0=blk["dil0"], dil1=blk["dil1"]))
        if blk["kind"] == "block2":
            Lc = (L - k0) // 2 + 1
            Ld = (L - 1) // 2 + 1
            assert Lc == Ld, "stride-2 conv / downsample length mismatch"
            Lnew = Lc
        else:
            Lnew = L
        flops += 2 * N * Lnew * (w0.shape[1] * w0.shape[2] * k0
                                 + w1.shape[1] * w1.shape[2] * k1
                                 + wd.shape[1] * wd.shape[2])
        L = Lnew

    L_out = L
    C_out = blocks[-1]["tcn1"]["w"].shape[2]

    kernel = functools.partial(_tempnet_kernel, cfg=tuple(cfg), B=B,
                               L_in=L_in)
    bytes_accessed = int(x.size * 4 + sum(int(p.size) * 4 for p in params)
                         + num_steps * B * L_out * C_out * 4)

    out = pl.pallas_call(
        kernel,
        grid=(num_steps,),
        in_specs=[pl.BlockSpec((1, B * L_in, C_in), lambda g: (g, 0, 0))]
                 + [_const_spec(p.shape) for p in params],
        out_specs=pl.BlockSpec((1, B * L_out, C_out), lambda g: (g, 0, 0)),
        out_shape=jax.ShapeDtypeStruct((num_steps, B * L_out, C_out),
                                       jnp.float32),
        compiler_params=pltpu.CompilerParams(
            dimension_semantics=("parallel",)),
        cost_estimate=pl.CostEstimate(flops=int(flops), transcendentals=0,
                                      bytes_accessed=bytes_accessed),
    )(x, *params)

    out = out.reshape(N, L_out, C_out)
    return jnp.transpose(out, (0, 2, 1))           # NLC -> NCL


# ----------------------------------------------------------------------------
# Deterministic parameter construction mirroring TempNet.__init__
# ----------------------------------------------------------------------------
def _make_unit(key, k, cin, cout):
    ks = jax.random.split(key, 6)
    w = 0.2 * jax.random.normal(ks[0], (k, cin, cout), jnp.float32)
    b = 0.05 * jax.random.normal(ks[1], (cout,), jnp.float32)
    gamma = 1.0 + 0.1 * jax.random.normal(ks[2], (cout,), jnp.float32)
    beta = 0.1 * jax.random.normal(ks[3], (cout,), jnp.float32)
    mean = 0.1 * jax.random.normal(ks[4], (cout,), jnp.float32)
    var = 1.0 + 0.1 * jnp.abs(jax.random.normal(ks[5], (cout,), jnp.float32))
    inv = gamma / jnp.sqrt(var + BN_EPS)
    scale = inv
    shift = beta - mean * inv + b * inv            # conv bias folded into shift
    return dict(w=w, b=b, gamma=gamma, beta=beta, mean=mean, var=var,
                scale=scale, shift=shift)


def build_tempnet_params(key, num_inputs, num_channels, kernel_size,
                         use_dilation=True):
    num_levels = len(num_channels)
    original_rf = [(kernel_size - 1) * 2 ** i + 1 for i in range(num_levels)]
    blocks = []
    for i in range(num_levels):
        if use_dilation:
            dil = [2 ** i, 2 ** i]
            k = [ceil(original_rf[i] / dil[0]), ceil(original_rf[i] / dil[1])]
        else:
            dil = [1, 1]
            k = [original_rf[i], original_rf[i]]
        ch_in = [num_inputs, num_channels[0]] if i == 0 else \
                [num_channels[i - 1], num_channels[i]]
        ch_out = [num_channels[i], num_channels[i]]
        kind = "block1" if i % 2 != 0 else "block2"
        key, k0, k1, kd = jax.random.split(key, 4)
        blocks.append(dict(
            kind=kind, dil0=dil[0], dil1=dil[1],
            tcn0=_make_unit(k0, k[0], ch_in[0], ch_out[0]),
            tcn1=_make_unit(k1, k[1], ch_in[1], ch_out[1]),
            down=_make_unit(kd, 1, ch_in[0], ch_out[1]),
        ))
    return blocks


# ----------------------------------------------------------------------------
# Pure-JAX (lax.conv) reference, NCL layout like PyTorch, for validation.
# ----------------------------------------------------------------------------
def _ref_conv(x_ncl, unit, *, stride, dilation, pad_lr):
    w_oik = jnp.transpose(unit["w"], (2, 1, 0))   # (K,Cin,Cout) -> (Cout,Cin,K)
    y = lax.conv_general_dilated(x_ncl, w_oik, window_strides=(stride,),
                                 padding=[pad_lr], rhs_dilation=(dilation,),
                                 dimension_numbers=("NCH", "OIH", "NCH"))
    return y + unit["b"][None, :, None]


def _ref_bn(x, unit):
    inv = unit["gamma"] / jnp.sqrt(unit["var"] + BN_EPS)
    return x * inv[None, :, None] + (unit["beta"] - unit["mean"] * inv)[None, :, None]


def _same_pad(K, d):
    total = d * (K - 1)
    return (total // 2, total - total // 2)


def tempnet_ref(x_ncl, blocks):
    y = x_ncl
    for blk in blocks:
        t0, t1, dn = blk["tcn0"], blk["tcn1"], blk["down"]
        if blk["kind"] == "block2":
            x1 = jnp.maximum(_ref_bn(_ref_conv(y, t0, stride=2, dilation=1,
                                               pad_lr=(0, 0)), t0), 0.0)
            r = jnp.maximum(_ref_bn(_ref_conv(y, dn, stride=2, dilation=1,
                                              pad_lr=(0, 0)), dn), 0.0)
        else:
            x1 = jnp.maximum(_ref_bn(_ref_conv(
                y, t0, stride=1, dilation=blk["dil0"],
                pad_lr=_same_pad(t0["w"].shape[0], blk["dil0"])), t0), 0.0)
            r = jnp.maximum(_ref_bn(_ref_conv(y, dn, stride=1, dilation=1,
                                              pad_lr=(0, 0)), dn), 0.0)
        x2 = _ref_bn(_ref_conv(x1, t1, stride=1, dilation=blk["dil1"],
                               pad_lr=_same_pad(t1["w"].shape[0], blk["dil1"])),
                     t1)
        y = jnp.maximum(x2 + r, 0.0)
    return y


if __name__ == "__main__":
    num_inputs, num_channels, kernel_size = 4, [8, 8, 16], 2
    key = jax.random.PRNGKey(0)
    kx, kp = jax.random.split(key)
    x = jax.random.normal(kx, (2, num_inputs, 16), jnp.float32)   # NCL input

    blocks = build_tempnet_params(kp, num_inputs, num_channels, kernel_size)

    out = tempnet_pallas(x, blocks)
    out = jax.block_until_ready(out)

    ref = tempnet_ref(x, blocks)
    assert out.shape == ref.shape == (2, 16, 4), (out.shape, ref.shape)
    err = float(jnp.max(jnp.abs(out - ref)))
    assert jnp.allclose(out, ref, atol=1e-3, rtol=1e-3), f"max abs err {err}"
    print("KERNEL_OK")
</pallas_src>

<mosaic_0001>
module attributes {stable_mosaic.version = 11 : i64} {
  func.func @_tempnet_kernel(%arg0: i32, %arg1: memref<1x16x4xf32, #tpu.memory_space<vmem>>, %arg2: memref<2x4x8xf32, #tpu.memory_space<vmem>>, %arg3: memref<1x8xf32, #tpu.memory_space<vmem>>, %arg4: memref<2x8x8xf32, #tpu.memory_space<vmem>>, %arg5: memref<1x8xf32, #tpu.memory_space<vmem>>, %arg6: memref<4x8xf32, #tpu.memory_space<vmem>>, %arg7: memref<1x8xf32, #tpu.memory_space<vmem>>, %arg8: memref<2x8x8xf32, #tpu.memory_space<vmem>>, %arg9: memref<1x8xf32, #tpu.memory_space<vmem>>, %arg10: memref<2x8x8xf32, #tpu.memory_space<vmem>>, %arg11: memref<1x8xf32, #tpu.memory_space<vmem>>, %arg12: memref<8x8xf32, #tpu.memory_space<vmem>>, %arg13: memref<1x8xf32, #tpu.memory_space<vmem>>, %arg14: memref<2x8x16xf32, #tpu.memory_space<vmem>>, %arg15: memref<1x16xf32, #tpu.memory_space<vmem>>, %arg16: memref<2x16x16xf32, #tpu.memory_space<vmem>>, %arg17: memref<1x16xf32, #tpu.memory_space<vmem>>, %arg18: memref<8x16xf32, #tpu.memory_space<vmem>>, %arg19: memref<1x16xf32, #tpu.memory_space<vmem>>, %arg20: memref<1x4x16xf32, #tpu.memory_space<vmem>>) attributes {dimension_semantics = [#tpu.dimension_semantics<parallel>], iteration_bounds = array<i64: 2>, scalar_prefetch = 0 : i64, scratch_operands = 0 : i64, tpu.core_type = #tpu.core_type<tc>, window_params = [{transform_indices = @transform_0, window_bounds = array<i64: 1, 16, 4>}, {pipeline_mode = #tpu.pipeline_mode<synchronous>, transform_indices = @transform_1, window_bounds = array<i64: 2, 4, 8>}, {pipeline_mode = #tpu.pipeline_mode<synchronous>, transform_indices = @transform_2, window_bounds = array<i64: 1, 8>}, {pipeline_mode = #tpu.pipeline_mode<synchronous>, transform_indices = @transform_3, window_bounds = array<i64: 2, 8, 8>}, {pipeline_mode = #tpu.pipeline_mode<synchronous>, transform_indices = @transform_4, window_bounds = array<i64: 1, 8>}, {pipeline_mode = #tpu.pipeline_mode<synchronous>, transform_indices = @transform_5, window_bounds = array<i64: 4, 8>}, {pipeline_mode = #tpu.pipeline_mode<synchronous>, transform_indices = @transform_6, window_bounds = array<i64: 1, 8>}, {pipeline_mode = #tpu.pipeline_mode<synchronous>, transform_indices = @transform_7, window_bounds = array<i64: 2, 8, 8>}, {pipeline_mode = #tpu.pipeline_mode<synchronous>, transform_indices = @transform_8, window_bounds = array<i64: 1, 8>}, {pipeline_mode = #tpu.pipeline_mode<synchronous>, transform_indices = @transform_9, window_bounds = array<i64: 2, 8, 8>}, {pipeline_mode = #tpu.pipeline_mode<synchronous>, transform_indices = @transform_10, window_bounds = array<i64: 1, 8>}, {pipeline_mode = #tpu.pipeline_mode<synchronous>, transform_indices = @transform_11, window_bounds = array<i64: 8, 8>}, {pipeline_mode = #tpu.pipeline_mode<synchronous>, transform_indices = @transform_12, window_bounds = array<i64: 1, 8>}, {pipeline_mode = #tpu.pipeline_mode<synchronous>, transform_indices = @transform_13, window_bounds = array<i64: 2, 8, 16>}, {pipeline_mode = #tpu.pipeline_mode<synchronous>, transform_indices = @transform_14, window_bounds = array<i64: 1, 16>}, {pipeline_mode = #tpu.pipeline_mode<synchronous>, transform_indices = @transform_15, window_bounds = array<i64: 2, 16, 16>}, {pipeline_mode = #tpu.pipeline_mode<synchronous>, transform_indices = @transform_16, window_bounds = array<i64: 1, 16>}, {pipeline_mode = #tpu.pipeline_mode<synchronous>, transform_indices = @transform_17, window_bounds = array<i64: 8, 16>}, {pipeline_mode = #tpu.pipeline_mode<synchronous>, transform_indices = @transform_18, window_bounds = array<i64: 1, 16>}, {transform_indices = @transform_19, window_bounds = array<i64: 1, 4, 16>}]} {
    %c0 = arith.constant 0 : index
    %c0_0 = arith.constant 0 : index
    %c0_1 = arith.constant 0 : index
    %0 = vector.load %arg1[%c0, %c0_0, %c0_1] : memref<1x16x4xf32, #tpu.memory_space<vmem>>, vector<1x16x4xf32>
    %1 = vector.shape_cast %0 : vector<1x16x4xf32> to vector<16x4xf32>
    %c0_2 = arith.constant 0 : index
    %c0_3 = arith.constant 0 : index
    %c0_4 = arith.constant 0 : index
    %2 = vector.load %arg2[%c0_2, %c0_3, %c0_4] : memref<2x4x8xf32, #tpu.memory_space<vmem>>, vector<1x4x8xf32>
    %3 = vector.shape_cast %2 : vector<1x4x8xf32> to vector<4x8xf32>
    %c1 = arith.constant 1 : index
    %c0_5 = arith.constant 0 : index
    %c0_6 = arith.constant 0 : index
    %4 = vector.load %arg2[%c1, %c0_5, %c0_6] : memref<2x4x8xf32, #tpu.memory_space<vmem>>, vector<1x4x8xf32>
    %5 = vector.shape_cast %4 : vector<1x4x8xf32> to vector<4x8xf32>
    %c0_7 = arith.constant 0 : index
    %c0_8 = arith.constant 0 : index
    %c0_9 = arith.constant 0 : index
    %6 = vector.load %arg4[%c0_7, %c0_8, %c0_9] : memref<2x8x8xf32, #tpu.memory_space<vmem>>, vector<1x8x8xf32>
    %7 = vector.shape_cast %6 : vector<1x8x8xf32> to vector<8x8xf32>
    %c1_10 = arith.constant 1 : index
    %c0_11 = arith.constant 0 : index
    %c0_12 = arith.constant 0 : index
    %8 = vector.load %arg4[%c1_10, %c0_11, %c0_12] : memref<2x8x8xf32, #tpu.memory_space<vmem>>, vector<1x8x8xf32>
    %9 = vector.shape_cast %8 : vector<1x8x8xf32> to vector<8x8xf32>
    %c0_13 = arith.constant 0 : index
    %c0_14 = arith.constant 0 : index
    %10 = vector.load %arg6[%c0_13, %c0_14] : memref<4x8xf32, #tpu.memory_space<vmem>>, vector<4x8xf32>
    %c0_15 = arith.constant 0 : index
    %c0_16 = arith.constant 0 : index
    %11 = vector.load %arg3[%c0_15, %c0_16] : memref<1x8xf32, #tpu.memory_space<vmem>>, vector<1x8xf32>
    %c0_17 = arith.constant 0 : index
    %c0_18 = arith.constant 0 : index
    %12 = vector.load %arg5[%c0_17, %c0_18] : memref<1x8xf32, #tpu.memory_space<vmem>>, vector<1x8xf32>
    %c0_19 = arith.constant 0 : index
    %c0_20 = arith.constant 0 : index
    %13 = vector.load %arg7[%c0_19, %c0_20] : memref<1x8xf32, #tpu.memory_space<vmem>>, vector<1x8xf32>
    %14 = tpu.iota {dimensions = array<i32: 0>} : vector<8x16xi32>
    %15 = tpu.iota {dimensions = array<i32: 1>} : vector<8x16xi32>
    %c2_i32 = arith.constant 2 : i32
    %16 = vector.broadcast %c2_i32 : i32 to vector<8x16xi32>
    %17 = arith.muli %14, %16 : vector<8x16xi32>
    %c0_i32 = arith.constant 0 : i32
    %18 = vector.broadcast %c0_i32 : i32 to vector<8x16xi32>
    %19 = arith.addi %17, %18 : vector<8x16xi32>
    %20 = arith.cmpi eq, %15, %19 : vector<8x16xi32>
    %21 = arith.extui %20 : vector<8x16xi1> to vector<8x16xi32>
    %22 = arith.sitofp %21 : vector<8x16xi32> to vector<8x16xf32>
    %cst = arith.constant dense<0.000000e+00> : vector<8x4xf32>
    %23 = tpu.matmul %22, %1, %cst {dimension_numbers = #tpu.dot_dimension_numbers<[1], [0], [0], [1], [0, 0, 1, 1], [], []>} : vector<8x16xf32>, vector<16x4xf32>, vector<8x4xf32> -> vector<8x4xf32>
    %cst_21 = arith.constant dense<0.000000e+00> : vector<8x8xf32>
    %24 = tpu.matmul %23, %3, %cst_21 {dimension_numbers = #tpu.dot_dimension_numbers<[1], [0], [0], [1], [0, 0, 1, 1], [], []>} : vector<8x4xf32>, vector<4x8xf32>, vector<8x8xf32> -> vector<8x8xf32>
    %25 = tpu.iota {dimensions = array<i32: 0>} : vector<8x16xi32>
    %26 = tpu.iota {dimensions = array<i32: 1>} : vector<8x16xi32>
    %c2_i32_22 = arith.constant 2 : i32
    %27 = vector.broadcast %c2_i32_22 : i32 to vector<8x16xi32>
    %28 = arith.muli %25, %27 : vector<8x16xi32>
    %c1_i32 = arith.constant 1 : i32
    %29 = vector.broadcast %c1_i32 : i32 to vector<8x16xi32>
    %30 = arith.addi %28, %29 : vector<8x16xi32>
    %31 = arith.cmpi eq, %26, %30 : vector<8x16xi32>
    %32 = arith.extui %31 : vector<8x16xi1> to vector<8x16xi32>
    %33 = arith.sitofp %32 : vector<8x16xi32> to vector<8x16xf32>
    %cst_23 = arith.constant dense<0.000000e+00> : vector<8x4xf32>
    %34 = tpu.matmul %33, %1, %cst_23 {dimension_numbers = #tpu.dot_dimension_numbers<[1], [0], [0], [1], [0, 0, 1, 1], [], []>} : vector<8x16xf32>, vector<16x4xf32>, vector<8x4xf32> -> vector<8x4xf32>
    %cst_24 = arith.constant dense<0.000000e+00> : vector<8x8xf32>
    %35 = tpu.matmul %34, %5, %cst_24 {dimension_numbers = #tpu.dot_dimension_numbers<[1], [0], [0], [1], [0, 0, 1, 1], [], []>} : vector<8x4xf32>, vector<4x8xf32>, vector<8x8xf32> -> vector<8x8xf32>
    %36 = arith.addf %24, %35 : vector<8x8xf32>
    %37 = vector.broadcast %11 : vector<1x8xf32> to vector<8x8xf32>
    %38 = arith.addf %36, %37 : vector<8x8xf32>
    %cst_25 = arith.constant 0.000000e+00 : f32
    %39 = vector.broadcast %cst_25 : f32 to vector<8x8xf32>
    %40 = arith.maximumf %38, %39 : vector<8x8xf32>
    %cst_26 = arith.constant dense<0.000000e+00> : vector<8x4xf32>
    %41 = tpu.matmul %22, %1, %cst_26 {dimension_numbers = #tpu.dot_dimension_numbers<[1], [0], [0], [1], [0, 0, 1, 1], [], []>} : vector<8x16xf32>, vector<16x4xf32>, vector<8x4xf32> -> vector<8x4xf32>
    %cst_27 = arith.constant dense<0.000000e+00> : vector<8x8xf32>
    %42 = tpu.matmul %41, %10, %cst_27 {dimension_numbers = #tpu.dot_dimension_numbers<[1], [0], [0], [1], [0, 0, 1, 1], [], []>} : vector<8x4xf32>, vector<4x8xf32>, vector<8x8xf32> -> vector<8x8xf32>
    %43 = vector.broadcast %13 : vector<1x8xf32> to vector<8x8xf32>
    %44 = arith.addf %42, %43 : vector<8x8xf32>
    %cst_28 = arith.constant 0.000000e+00 : f32
    %45 = vector.broadcast %cst_28 : f32 to vector<8x8xf32>
    %46 = arith.maximumf %44, %45 : vector<8x8xf32>
    %cst_29 = arith.constant dense<0.000000e+00> : vector<8x8xf32>
    %47 = tpu.matmul %40, %7, %cst_29 {dimension_numbers = #tpu.dot_dimension_numbers<[1], [0], [0], [1], [0, 0, 1, 1], [], []>} : vector<8x8xf32>, vector<8x8xf32>, vector<8x8xf32> -> vector<8x8xf32>
    %48 = tpu.iota {dimensions = array<i32: 0>} : vector<8x8xi32>
    %49 = tpu.iota {dimensions = array<i32: 1>} : vector<8x8xi32>
    %c1_i32_30 = arith.constant 1 : i32
    %50 = vector.broadcast %c1_i32_30 : i32 to vector<8x8xi32>
    %51 = arith.muli %48, %50 : vector<8x8xi32>
    %c1_i32_31 = arith.constant 1 : i32
    %52 = vector.broadcast %c1_i32_31 : i32 to vector<8x8xi32>
    %53 = arith.addi %51, %52 : vector<8x8xi32>
    %54 = arith.cmpi eq, %49, %53 : vector<8x8xi32>
    %55 = arith.extui %54 : vector<8x8xi1> to vector<8x8xi32>
    %56 = arith.sitofp %55 : vector<8x8xi32> to vector<8x8xf32>
    %cst_32 = arith.constant dense<0.000000e+00> : vector<8x8xf32>
    %57 = tpu.matmul %56, %40, %cst_32 {dimension_numbers = #tpu.dot_dimension_numbers<[1], [0], [0], [1], [0, 0, 1, 1], [], []>} : vector<8x8xf32>, vector<8x8xf32>, vector<8x8xf32> -> vector<8x8xf32>
    %cst_33 = arith.constant dense<0.000000e+00> : vector<8x8xf32>
    %58 = tpu.matmul %57, %9, %cst_33 {dimension_numbers = #tpu.dot_dimension_numbers<[1], [0], [0], [1], [0, 0, 1, 1], [], []>} : vector<8x8xf32>, vector<8x8xf32>, vector<8x8xf32> -> vector<8x8xf32>
    %59 = arith.addf %47, %58 : vector<8x8xf32>
    %60 = vector.broadcast %12 : vector<1x8xf32> to vector<8x8xf32>
    %61 = arith.addf %59, %60 : vector<8x8xf32>
    %62 = arith.addf %61, %46 : vector<8x8xf32>
    %cst_34 = arith.constant 0.000000e+00 : f32
    %63 = vector.broadcast %cst_34 : f32 to vector<8x8xf32>
    %64 = arith.maximumf %62, %63 : vector<8x8xf32>
    %c0_35 = arith.constant 0 : index
    %c0_36 = arith.constant 0 : index
    %c0_37 = arith.constant 0 : index
    %65 = vector.load %arg8[%c0_35, %c0_36, %c0_37] : memref<2x8x8xf32, #tpu.memory_space<vmem>>, vector<1x8x8xf32>
    %66 = vector.shape_cast %65 : vector<1x8x8xf32> to vector<8x8xf32>
    %c1_38 = arith.constant 1 : index
    %c0_39 = arith.constant 0 : index
    %c0_40 = arith.constant 0 : index
    %67 = vector.load %arg8[%c1_38, %c0_39, %c0_40] : memref<2x8x8xf32, #tpu.memory_space<vmem>>, vector<1x8x8xf32>
    %68 = vector.shape_cast %67 : vector<1x8x8xf32> to vector<8x8xf32>
    %c0_41 = arith.constant 0 : index
    %c0_42 = arith.constant 0 : index
    %c0_43 = arith.constant 0 : index
    %69 = vector.load %arg10[%c0_41, %c0_42, %c0_43] : memref<2x8x8xf32, #tpu.memory_space<vmem>>, vector<1x8x8xf32>
    %70 = vector.shape_cast %69 : vector<1x8x8xf32> to vector<8x8xf32>
    %c1_44 = arith.constant 1 : index
    %c0_45 = arith.constant 0 : index
    %c0_46 = arith.constant 0 : index
    %71 = vector.load %arg10[%c1_44, %c0_45, %c0_46] : memref<2x8x8xf32, #tpu.memory_space<vmem>>, vector<1x8x8xf32>
    %72 = vector.shape_cast %71 : vector<1x8x8xf32> to vector<8x8xf32>
    %c0_47 = arith.constant 0 : index
    %c0_48 = arith.constant 0 : index
    %73 = vector.load %arg12[%c0_47, %c0_48] : memref<8x8xf32, #tpu.memory_space<vmem>>, vector<8x8xf32>
    %c0_49 = arith.constant 0 : index
    %c0_50 = arith.constant 0 : index
    %74 = vector.load %arg9[%c0_49, %c0_50] : memref<1x8xf32, #tpu.memory_space<vmem>>, vector<1x8xf32>
    %c0_51 = arith.constant 0 : index
    %c0_52 = arith.constant 0 : index
    %75 = vector.load %arg11[%c0_51, %c0_52] : memref<1x8xf32, #tpu.memory_space<vmem>>, vector<1x8xf32>
    %c0_53 = arith.constant 0 : index
    %c0_54 = arith.constant 0 : index
    %76 = vector.load %arg13[%c0_53, %c0_54] : memref<1x8xf32, #tpu.memory_space<vmem>>, vector<1x8xf32>
    %77 = tpu.iota {dimensions = array<i32: 0>} : vector<8x8xi32>
    %78 = tpu.iota {dimensions = array<i32: 1>} : vector<8x8xi32>
    %c1_i32_55 = arith.constant 1 : i32
    %79 = vector.broadcast %c1_i32_55 : i32 to vector<8x8xi32>
    %80 = arith.muli %77, %79 : vector<8x8xi32>
    %c-1_i32 = arith.constant -1 : i32
    %81 = vector.broadcast %c-1_i32 : i32 to vector<8x8xi32>
    %82 = arith.addi %80, %81 : vector<8x8xi32>
    %83 = arith.cmpi eq, %78, %82 : vector<8x8xi32>
    %84 = arith.extui %83 : vector<8x8xi1> to vector<8x8xi32>
    %85 = arith.sitofp %84 : vector<8x8xi32> to vector<8x8xf32>
    %cst_56 = arith.constant dense<0.000000e+00> : vector<8x8xf32>
    %86 = tpu.matmul %85, %64, %cst_56 {dimension_numbers = #tpu.dot_dimension_numbers<[1], [0], [0], [1], [0, 0, 1, 1], [], []>} : vector<8x8xf32>, vector<8x8xf32>, vector<8x8xf32> -> vector<8x8xf32>
    %cst_57 = arith.constant dense<0.000000e+00> : vector<8x8xf32>
    %87 = tpu.matmul %86, %66, %cst_57 {dimension_numbers = #tpu.dot_dimension_numbers<[1], [0], [0], [1], [0, 0, 1, 1], [], []>} : vector<8x8xf32>, vector<8x8xf32>, vector<8x8xf32> -> vector<8x8xf32>
    %cst_58 = arith.constant dense<0.000000e+00> : vector<8x8xf32>
    %88 = tpu.matmul %56, %64, %cst_58 {dimension_numbers = #tpu.dot_dimension_numbers<[1], [0], [0], [1], [0, 0, 1, 1], [], []>} : vector<8x8xf32>, vector<8x8xf32>, vector<8x8xf32> -> vector<8x8xf32>
    %cst_59 = arith.constant dense<0.000000e+00> : vector<8x8xf32>
    %89 = tpu.matmul %88, %68, %cst_59 {dimension_numbers = #tpu.dot_dimension_numbers<[1], [0], [0], [1], [0, 0, 1, 1], [], []>} : vector<8x8xf32>, vector<8x8xf32>, vector<8x8xf32> -> vector<8x8xf32>
    %90 = arith.addf %87, %89 : vector<8x8xf32>
    %91 = vector.broadcast %74 : vector<1x8xf32> to vector<8x8xf32>
    %92 = arith.addf %90, %91 : vector<8x8xf32>
    %cst_60 = arith.constant 0.000000e+00 : f32
    %93 = vector.broadcast %cst_60 : f32 to vector<8x8xf32>
    %94 = arith.maximumf %92, %93 : vector<8x8xf32>
    %cst_61 = arith.constant dense<0.000000e+00> : vector<8x8xf32>
    %95 = tpu.matmul %64, %73, %cst_61 {dimension_numbers = #tpu.dot_dimension_numbers<[1], [0], [0], [1], [0, 0, 1, 1], [], []>} : vector<8x8xf32>, vector<8x8xf32>, vector<8x8xf32> -> vector<8x8xf32>
    %96 = vector.broadcast %76 : vector<1x8xf32> to vector<8x8xf32>
    %97 = arith.addf %95, %96 : vector<8x8xf32>
    %cst_62 = arith.constant 0.000000e+00 : f32
    %98 = vector.broadcast %cst_62 : f32 to vector<8x8xf32>
    %99 = arith.maximumf %97, %98 : vector<8x8xf32>
    %cst_63 = arith.constant dense<0.000000e+00> : vector<8x8xf32>
    %100 = tpu.matmul %85, %94, %cst_63 {dimension_numbers = #tpu.dot_dimension_numbers<[1], [0], [0], [1], [0, 0, 1, 1], [], []>} : vector<8x8xf32>, vector<8x8xf32>, vector<8x8xf32> -> vector<8x8xf32>
    %cst_64 = arith.constant dense<0.000000e+00> : vector<8x8xf32>
    %101 = tpu.matmul %100, %70, %cst_64 {dimension_numbers = #tpu.dot_dimension_numbers<[1], [0], [0], [1], [0, 0, 1, 1], [], []>} : vector<8x8xf32>, vector<8x8xf32>, vector<8x8xf32> -> vector<8x8xf32>
    %cst_65 = arith.constant dense<0.000000e+00> : vector<8x8xf32>
    %102 = tpu.matmul %56, %94, %cst_65 {dimension_numbers = #tpu.dot_dimension_numbers<[1], [0], [0], [1], [0, 0, 1, 1], [], []>} : vector<8x8xf32>, vector<8x8xf32>, vector<8x8xf32> -> vector<8x8xf32>
    %cst_66 = arith.constant dense<0.000000e+00> : vector<8x8xf32>
    %103 = tpu.matmul %102, %72, %cst_66 {dimension_numbers = #tpu.dot_dimension_numbers<[1], [0], [0], [1], [0, 0, 1, 1], [], []>} : vector<8x8xf32>, vector<8x8xf32>, vector<8x8xf32> -> vector<8x8xf32>
    %104 = arith.addf %101, %103 : vector<8x8xf32>
    %105 = vector.broadcast %75 : vector<1x8xf32> to vector<8x8xf32>
    %106 = arith.addf %104, %105 : vector<8x8xf32>
    %107 = arith.addf %106, %99 : vector<8x8xf32>
    %cst_67 = arith.constant 0.000000e+00 : f32
    %108 = vector.broadcast %cst_67 : f32 to vector<8x8xf32>
    %109 = arith.maximumf %107, %108 : vector<8x8xf32>
    %c0_68 = arith.constant 0 : index
    %c0_69 = arith.constant 0 : index
    %c0_70 = arith.constant 0 : index
    %110 = vector.load %arg14[%c0_68, %c0_69, %c0_70] : memref<2x8x16xf32, #tpu.memory_space<vmem>>, vector<1x8x16xf32>
    %111 = vector.shape_cast %110 : vector<1x8x16xf32> to vector<8x16xf32>
    %c1_71 = arith.constant 1 : index
    %c0_72 = arith.constant 0 : index
    %c0_73 = arith.constant 0 : index
    %112 = vector.load %arg14[%c1_71, %c0_72, %c0_73] : memref<2x8x16xf32, #tpu.memory_space<vmem>>, vector<1x8x16xf32>
    %113 = vector.shape_cast %112 : vector<1x8x16xf32> to vector<8x16xf32>
    %c0_74 = arith.constant 0 : index
    %c0_75 = arith.constant 0 : index
    %c0_76 = arith.constant 0 : index
    %114 = vector.load %arg16[%c0_74, %c0_75, %c0_76] : memref<2x16x16xf32, #tpu.memory_space<vmem>>, vector<1x16x16xf32>
    %115 = vector.shape_cast %114 : vector<1x16x16xf32> to vector<16x16xf32>
    %c1_77 = arith.constant 1 : index
    %c0_78 = arith.constant 0 : index
    %c0_79 = arith.constant 0 : index
    %116 = vector.load %arg16[%c1_77, %c0_78, %c0_79] : memref<2x16x16xf32, #tpu.memory_space<vmem>>, vector<1x16x16xf32>
    %117 = vector.shape_cast %116 : vector<1x16x16xf32> to vector<16x16xf32>
    %c0_80 = arith.constant 0 : index
    %c0_81 = arith.constant 0 : index
    %118 = vector.load %arg18[%c0_80, %c0_81] : memref<8x16xf32, #tpu.memory_space<vmem>>, vector<8x16xf32>
    %c0_82 = arith.constant 0 : index
    %c0_83 = arith.constant 0 : index
    %119 = vector.load %arg15[%c0_82, %c0_83] : memref<1x16xf32, #tpu.memory_space<vmem>>, vector<1x16xf32>
    %c0_84 = arith.constant 0 : index
    %c0_85 = arith.constant 0 : index
    %120 = vector.load %arg17[%c0_84, %c0_85] : memref<1x16xf32, #tpu.memory_space<vmem>>, vector<1x16xf32>
    %c0_86 = arith.constant 0 : index
    %c0_87 = arith.constant 0 : index
    %121 = vector.load %arg19[%c0_86, %c0_87] : memref<1x16xf32, #tpu.memory_space<vmem>>, vector<1x16xf32>
    %122 = tpu.iota {dimensions = array<i32: 0>} : vector<4x8xi32>
    %123 = tpu.iota {dimensions = array<i32: 1>} : vector<4x8xi32>
    %c2_i32_88 = arith.constant 2 : i32
    %124 = vector.broadcast %c2_i32_88 : i32 to vector<4x8xi32>
    %125 = arith.muli %122, %124 : vector<4x8xi32>
    %c0_i32_89 = arith.constant 0 : i32
    %126 = vector.broadcast %c0_i32_89 : i32 to vector<4x8xi32>
    %127 = arith.addi %125, %126 : vector<4x8xi32>
    %128 = arith.cmpi eq, %123, %127 : vector<4x8xi32>
    %129 = arith.extui %128 : vector<4x8xi1> to vector<4x8xi32>
    %130 = arith.sitofp %129 : vector<4x8xi32> to vector<4x8xf32>
    %cst_90 = arith.constant dense<0.000000e+00> : vector<4x8xf32>
    %131 = tpu.matmul %130, %109, %cst_90 {dimension_numbers = #tpu.dot_dimension_numbers<[1], [0], [0], [1], [0, 0, 1, 1], [], []>} : vector<4x8xf32>, vector<8x8xf32>, vector<4x8xf32> -> vector<4x8xf32>
    %cst_91 = arith.constant dense<0.000000e+00> : vector<4x16xf32>
    %132 = tpu.matmul %131, %111, %cst_91 {dimension_numbers = #tpu.dot_dimension_numbers<[1], [0], [0], [1], [0, 0, 1, 1], [], []>} : vector<4x8xf32>, vector<8x16xf32>, vector<4x16xf32> -> vector<4x16xf32>
    %133 = tpu.iota {dimensions = array<i32: 0>} : vector<4x8xi32>
    %134 = tpu.iota {dimensions = array<i32: 1>} : vector<4x8xi32>
    %c2_i32_92 = arith.constant 2 : i32
    %135 = vector.broadcast %c2_i32_92 : i32 to vector<4x8xi32>
    %136 = arith.muli %133, %135 : vector<4x8xi32>
    %c1_i32_93 = arith.constant 1 : i32
    %137 = vector.broadcast %c1_i32_93 : i32 to vector<4x8xi32>
    %138 = arith.addi %136, %137 : vector<4x8xi32>
    %139 = arith.cmpi eq, %134, %138 : vector<4x8xi32>
    %140 = arith.extui %139 : vector<4x8xi1> to vector<4x8xi32>
    %141 = arith.sitofp %140 : vector<4x8xi32> to vector<4x8xf32>
    %cst_94 = arith.constant dense<0.000000e+00> : vector<4x8xf32>
    %142 = tpu.matmul %141, %109, %cst_94 {dimension_numbers = #tpu.dot_dimension_numbers<[1], [0], [0], [1], [0, 0, 1, 1], [], []>} : vector<4x8xf32>, vector<8x8xf32>, vector<4x8xf32> -> vector<4x8xf32>
    %cst_95 = arith.constant dense<0.000000e+00> : vector<4x16xf32>
    %143 = tpu.matmul %142, %113, %cst_95 {dimension_numbers = #tpu.dot_dimension_numbers<[1], [0], [0], [1], [0, 0, 1, 1], [], []>} : vector<4x8xf32>, vector<8x16xf32>, vector<4x16xf32> -> vector<4x16xf32>
    %144 = arith.addf %132, %143 : vector<4x16xf32>
    %145 = vector.broadcast %119 : vector<1x16xf32> to vector<4x16xf32>
    %146 = arith.addf %144, %145 : vector<4x16xf32>
    %cst_96 = arith.constant 0.000000e+00 : f32
    %147 = vector.broadcast %cst_96 : f32 to vector<4x16xf32>
    %148 = arith.maximumf %146, %147 : vector<4x16xf32>
    %cst_97 = arith.constant dense<0.000000e+00> : vector<4x8xf32>
    %149 = tpu.matmul %130, %109, %cst_97 {dimension_numbers = #tpu.dot_dimension_numbers<[1], [0], [0], [1], [0, 0, 1, 1], [], []>} : vector<4x8xf32>, vector<8x8xf32>, vector<4x8xf32> -> vector<4x8xf32>
    %cst_98 = arith.constant dense<0.000000e+00> : vector<4x16xf32>
    %150 = tpu.matmul %149, %118, %cst_98 {dimension_numbers = #tpu.dot_dimension_numbers<[1], [0], [0], [1], [0, 0, 1, 1], [], []>} : vector<4x8xf32>, vector<8x16xf32>, vector<4x16xf32> -> vector<4x16xf32>
    %151 = vector.broadcast %121 : vector<1x16xf32> to vector<4x16xf32>
    %152 = arith.addf %150, %151 : vector<4x16xf32>
    %cst_99 = arith.constant 0.000000e+00 : f32
    %153 = vector.broadcast %cst_99 : f32 to vector<4x16xf32>
    %154 = arith.maximumf %152, %153 : vector<4x16xf32>
    %155 = tpu.iota {dimensions = array<i32: 0>} : vector<4x4xi32>
    %156 = tpu.iota {dimensions = array<i32: 1>} : vector<4x4xi32>
    %c1_i32_100 = arith.constant 1 : i32
    %157 = vector.broadcast %c1_i32_100 : i32 to vector<4x4xi32>
    %158 = arith.muli %155, %157 : vector<4x4xi32>
    %c-2_i32 = arith.constant -2 : i32
    %159 = vector.broadcast %c-2_i32 : i32 to vector<4x4xi32>
    %160 = arith.addi %158, %159 : vector<4x4xi32>
    %161 = arith.cmpi eq, %156, %160 : vector<4x4xi32>
    %162 = arith.extui %161 : vector<4x4xi1> to vector<4x4xi32>
    %163 = arith.sitofp %162 : vector<4x4xi32> to vector<4x4xf32>
    %cst_101 = arith.constant dense<0.000000e+00> : vector<4x16xf32>
    %164 = tpu.matmul %163, %148, %cst_101 {dimension_numbers = #tpu.dot_dimension_numbers<[1], [0], [0], [1], [0, 0, 1, 1], [], []>} : vector<4x4xf32>, vector<4x16xf32>, vector<4x16xf32> -> vector<4x16xf32>
    %cst_102 = arith.constant dense<0.000000e+00> : vector<4x16xf32>
    %165 = tpu.matmul %164, %115, %cst_102 {dimension_numbers = #tpu.dot_dimension_numbers<[1], [0], [0], [1], [0, 0, 1, 1], [], []>} : vector<4x16xf32>, vector<16x16xf32>, vector<4x16xf32> -> vector<4x16xf32>
    %166 = tpu.iota {dimensions = array<i32: 0>} : vector<4x4xi32>
    %167 = tpu.iota {dimensions = array<i32: 1>} : vector<4x4xi32>
    %c1_i32_103 = arith.constant 1 : i32
    %168 = vector.broadcast %c1_i32_103 : i32 to vector<4x4xi32>
    %169 = arith.muli %166, %168 : vector<4x4xi32>
    %c2_i32_104 = arith.constant 2 : i32
    %170 = vector.broadcast %c2_i32_104 : i32 to vector<4x4xi32>
    %171 = arith.addi %169, %170 : vector<4x4xi32>
    %172 = arith.cmpi eq, %167, %171 : vector<4x4xi32>
    %173 = arith.extui %172 : vector<4x4xi1> to vector<4x4xi32>
    %174 = arith.sitofp %173 : vector<4x4xi32> to vector<4x4xf32>
    %cst_105 = arith.constant dense<0.000000e+00> : vector<4x16xf32>
    %175 = tpu.matmul %174, %148, %cst_105 {dimension_numbers = #tpu.dot_dimension_numbers<[1], [0], [0], [1], [0, 0, 1, 1], [], []>} : vector<4x4xf32>, vector<4x16xf32>, vector<4x16xf32> -> vector<4x16xf32>
    %cst_106 = arith.constant dense<0.000000e+00> : vector<4x16xf32>
    %176 = tpu.matmul %175, %117, %cst_106 {dimension_numbers = #tpu.dot_dimension_numbers<[1], [0], [0], [1], [0, 0, 1, 1], [], []>} : vector<4x16xf32>, vector<16x16xf32>, vector<4x16xf32> -> vector<4x16xf32>
    %177 = arith.addf %165, %176 : vector<4x16xf32>
    %178 = vector.broadcast %120 : vector<1x16xf32> to vector<4x16xf32>
    %179 = arith.addf %177, %178 : vector<4x16xf32>
    %180 = arith.addf %179, %154 : vector<4x16xf32>
    %cst_107 = arith.constant 0.000000e+00 : f32
    %181 = vector.broadcast %cst_107 : f32 to vector<4x16xf32>
    %182 = arith.maximumf %180, %181 : vector<4x16xf32>
    %c0_108 = arith.constant 0 : index
    %c0_109 = arith.constant 0 : index
    %c0_110 = arith.constant 0 : index
    %183 = vector.load %arg20[%c0_108, %c0_109, %c0_110] : memref<1x4x16xf32, #tpu.memory_space<vmem>>, vector<1x4x16xf32>
    %184 = vector.shape_cast %183 : vector<1x4x16xf32> to vector<4x16xf32>
    %185 = vector.shape_cast %182 : vector<4x16xf32> to vector<1x4x16xf32>
    tpu.vector_store %arg20[%c0_108, %c0_109, %c0_110], %185 {strides = array<i32>} : memref<1x4x16xf32, #tpu.memory_space<vmem>>, vector<1x4x16xf32>,
    return
  }
  func.func @transform_0(%arg0: i32) -> (i32, i32, i32) {
    %c0_i32 = arith.constant 0 : i32
    %c0_i32_0 = arith.constant 0 : i32
    %c0_i32_1 = arith.constant 0 : i32
    return %arg0, %c0_i32, %c0_i32_0 : i32, i32, i32
  }
  func.func @transform_1(%arg0: i32) -> (i32, i32, i32) {
    %c0_i32 = arith.constant 0 : i32
    %c0_i32_0 = arith.constant 0 : i32
    %c0_i32_1 = arith.constant 0 : i32
    %c0_i32_2 = arith.constant 0 : i32
    return %c0_i32, %c0_i32_0, %c0_i32_1 : i32, i32, i32
  }
  func.func @transform_2(%arg0: i32) -> (i32, i32) {
    %c0_i32 = arith.constant 0 : i32
    %c0_i32_0 = arith.constant 0 : i32
    %c0_i32_1 = arith.constant 0 : i32
    return %c0_i32, %c0_i32_0 : i32, i32
  }
  func.func @transform_3(%arg0: i32) -> (i32, i32, i32) {
    %c0_i32 = arith.constant 0 : i32
    %c0_i32_0 = arith.constant 0 : i32
    %c0_i32_1 = arith.constant 0 : i32
    %c0_i32_2 = arith.constant 0 : i32
    return %c0_i32, %c0_i32_0, %c0_i32_1 : i32, i32, i32
  }
  func.func @transform_4(%arg0: i32) -> (i32, i32) {
    %c0_i32 = arith.constant 0 : i32
    %c0_i32_0 = arith.constant 0 : i32
    %c0_i32_1 = arith.constant 0 : i32
    return %c0_i32, %c0_i32_0 : i32, i32
  }
  func.func @transform_5(%arg0: i32) -> (i32, i32) {
    %c0_i32 = arith.constant 0 : i32
    %c0_i32_0 = arith.constant 0 : i32
    %c0_i32_1 = arith.constant 0 : i32
    return %c0_i32, %c0_i32_0 : i32, i32
  }
  func.func @transform_6(%arg0: i32) -> (i32, i32) {
    %c0_i32 = arith.constant 0 : i32
    %c0_i32_0 = arith.constant 0 : i32
    %c0_i32_1 = arith.constant 0 : i32
    return %c0_i32, %c0_i32_0 : i32, i32
  }
  func.func @transform_7(%arg0: i32) -> (i32, i32, i32) {
    %c0_i32 = arith.constant 0 : i32
    %c0_i32_0 = arith.constant 0 : i32
    %c0_i32_1 = arith.constant 0 : i32
    %c0_i32_2 = arith.constant 0 : i32
    return %c0_i32, %c0_i32_0, %c0_i32_1 : i32, i32, i32
  }
  func.func @transform_8(%arg0: i32) -> (i32, i32) {
    %c0_i32 = arith.constant 0 : i32
    %c0_i32_0 = arith.constant 0 : i32
    %c0_i32_1 = arith.constant 0 : i32
    return %c0_i32, %c0_i32_0 : i32, i32
  }
  func.func @transform_9(%arg0: i32) -> (i32, i32, i32) {
    %c0_i32 = arith.constant 0 : i32
    %c0_i32_0 = arith.constant 0 : i32
    %c0_i32_1 = arith.constant 0 : i32
    %c0_i32_2 = arith.constant 0 : i32
    return %c0_i32, %c0_i32_0, %c0_i32_1 : i32, i32, i32
  }
  func.func @transform_10(%arg0: i32) -> (i32, i32) {
    %c0_i32 = arith.constant 0 : i32
    %c0_i32_0 = arith.constant 0 : i32
    %c0_i32_1 = arith.constant 0 : i32
    return %c0_i32, %c0_i32_0 : i32, i32
  }
  func.func @transform_11(%arg0: i32) -> (i32, i32) {
    %c0_i32 = arith.constant 0 : i32
    %c0_i32_0 = arith.constant 0 : i32
    %c0_i32_1 = arith.constant 0 : i32
    return %c0_i32, %c0_i32_0 : i32, i32
  }
  func.func @transform_12(%arg0: i32) -> (i32, i32) {
    %c0_i32 = arith.constant 0 : i32
    %c0_i32_0 = arith.constant 0 : i32
    %c0_i32_1 = arith.constant 0 : i32
    return %c0_i32, %c0_i32_0 : i32, i32
  }
  func.func @transform_13(%arg0: i32) -> (i32, i32, i32) {
    %c0_i32 = arith.constant 0 : i32
    %c0_i32_0 = arith.constant 0 : i32
    %c0_i32_1 = arith.constant 0 : i32
    %c0_i32_2 = arith.constant 0 : i32
    return %c0_i32, %c0_i32_0, %c0_i32_1 : i32, i32, i32
  }
  func.func @transform_14(%arg0: i32) -> (i32, i32) {
    %c0_i32 = arith.constant 0 : i32
    %c0_i32_0 = arith.constant 0 : i32
    %c0_i32_1 = arith.constant 0 : i32
    return %c0_i32, %c0_i32_0 : i32, i32
  }
  func.func @transform_15(%arg0: i32) -> (i32, i32, i32) {
    %c0_i32 = arith.constant 0 : i32
    %c0_i32_0 = arith.constant 0 : i32
    %c0_i32_1 = arith.constant 0 : i32
    %c0_i32_2 = arith.constant 0 : i32
    return %c0_i32, %c0_i32_0, %c0_i32_1 : i32, i32, i32
  }
  func.func @transform_16(%arg0: i32) -> (i32, i32) {
    %c0_i32 = arith.constant 0 : i32
    %c0_i32_0 = arith.constant 0 : i32
    %c0_i32_1 = arith.constant 0 : i32
    return %c0_i32, %c0_i32_0 : i32, i32
  }
  func.func @transform_17(%arg0: i32) -> (i32, i32) {
    %c0_i32 = arith.constant 0 : i32
    %c0_i32_0 = arith.constant 0 : i32
    %c0_i32_1 = arith.constant 0 : i32
    return %c0_i32, %c0_i32_0 : i32, i32
  }
  func.func @transform_18(%arg0: i32) -> (i32, i32) {
    %c0_i32 = arith.constant 0 : i32
    %c0_i32_0 = arith.constant 0 : i32
    %c0_i32_1 = arith.constant 0 : i32
    return %c0_i32, %c0_i32_0 : i32, i32
  }
  func.func @transform_19(%arg0: i32) -> (i32, i32, i32) {
    %c0_i32 = arith.constant 0 : i32
    %c0_i32_0 = arith.constant 0 : i32
    %c0_i32_1 = arith.constant 0 : i32
    return %arg0, %c0_i32, %c0_i32_0 : i32, i32, i32
  }
}

</mosaic_0001>

<llo_original>
// kernel: tpu_custom_call.1
$region0: #{tpu_custom_call.1}
  #allocation0 [shape = 'u32[]', space=smem, size = 0x4, offset = 0x4, fixed_abs, tag = 'smem constant byte address 0x4 - core index']
  #allocation1 [shape = 'u32[72,128]{1,0:T(1,128)}', space=vmem, size = 0x9000, scoped, tag = 'internal scratch']
  %s0 = inlined_call_operand.vmem [shape: f32[2,16,4], index: 0, kind: input, shape index: {}]
  %s1 = inlined_call_operand.hbm [shape: f32[2,4,8], index: 1, kind: input, shape index: {}]
  %s2 = inlined_call_operand.hbm [shape: f32[1,8], index: 2, kind: input, shape index: {}]
  %s3 = inlined_call_operand.vmem [shape: f32[2,8,8], index: 3, kind: input, shape index: {}]
  %s4 = inlined_call_operand.hbm [shape: f32[1,8], index: 4, kind: input, shape index: {}]
  %s5 = inlined_call_operand.hbm [shape: f32[4,8], index: 5, kind: input, shape index: {}]
  %s6 = inlined_call_operand.hbm [shape: f32[1,8], index: 6, kind: input, shape index: {}]
  %s7 = inlined_call_operand.hbm [shape: f32[2,8,8], index: 7, kind: input, shape index: {}]
  %s8 = inlined_call_operand.hbm [shape: f32[1,8], index: 8, kind: input, shape index: {}]
  %s9 = inlined_call_operand.hbm [shape: f32[2,8,8], index: 9, kind: input, shape index: {}]
  %s10 = inlined_call_operand.hbm [shape: f32[1,8], index: 10, kind: input, shape index: {}]
  %s11 = inlined_call_operand.hbm [shape: f32[8,8], index: 11, kind: input, shape index: {}]
  %s12 = inlined_call_operand.hbm [shape: f32[1,8], index: 12, kind: input, shape index: {}]
  %s13 = inlined_call_operand.hbm [shape: f32[2,8,16], index: 13, kind: input, shape index: {}]
  %s14 = inlined_call_operand.hbm [shape: f32[1,16], index: 14, kind: input, shape index: {}]
  %s15 = inlined_call_operand.vmem [shape: f32[2,16,16], index: 15, kind: input, shape index: {}]
  %s16 = inlined_call_operand.hbm [shape: f32[1,16], index: 16, kind: input, shape index: {}]
  %s17 = inlined_call_operand.vmem [shape: f32[8,16], index: 17, kind: input, shape index: {}]
  %s18 = inlined_call_operand.vmem [shape: f32[1,16], index: 18, kind: input, shape index: {}]
  %s19 = inlined_call_operand.hbm [shape: f32[2,4,16], index: 19, kind: output, shape index: {}]
  %s20 = sld [smem:[#allocation0]]
  $region165: #{tpu_custom_call.1} parent=0
    _
  %s22 = ssub.s32 1, %s20
  %s23 = scalar_select 0, %s22, %s20
  $region1: #{tpu_custom_call.1} parent=0
    #allocation2 [shape = 'u8[4096]{0}', space=vmem, size = 0x1000, scoped, tag = 'input window, operand 1, single buffered']
    #allocation3 [shape = 's32[2]{0}', space=sflag, size = 0x8, scoped, tag = 'scoped memory for tpu_custom_call.1']
    #allocation4 [shape = 's32[2]{0}', space=sflag, size = 0x8, scoped, tag = 'scoped memory for tpu_custom_call.1']
    #allocation5 [shape = 'u8[512]{0}', space=vmem, size = 0x400, scoped, tag = 'input window, operand 2, single buffered']
    #allocation6 [shape = 's32[1]{0}', space=sflag, size = 0x4, scoped, tag = 'scoped memory for tpu_custom_call.1']
    #allocation7 [shape = 'u8[512]{0}', space=vmem, size = 0x400, scoped, tag = 'input window, operand 4, single buffered']
    #allocation8 [shape = 'u8[2048]{0}', space=vmem, size = 0x800, scoped, tag = 'input window, operand 5, single buffered']
    #allocation9 [shape = 's32[1]{0}', space=sflag, size = 0x4, scoped, tag = 'scoped memory for tpu_custom_call.1']
    #allocation10 [shape = 'u8[512]{0}', space=vmem, size = 0x400, scoped, tag = 'input window, operand 6, single buffered']
    #allocation11 [shape = 'u8[8192]{0}', space=vmem, size = 0x2000, scoped, tag = 'input window, operand 7, single buffered']
    #allocation12 [shape = 's32[1]{0}', space=sflag, size = 0x4, scoped, tag = 'scoped memory for tpu_custom_call.1']
    #allocation13 [shape = 'u8[512]{0}', space=vmem, size = 0x400, scoped, tag = 'input window, operand 8, single buffered']
    #allocation14 [shape = 'u8[8192]{0}', space=vmem, size = 0x2000, scoped, tag = 'input window, operand 9, single buffered']
    #allocation15 [shape = 's32[1]{0}', space=sflag, size = 0x4, scoped, tag = 'scoped memory for tpu_custom_call.1']
    #allocation16 [shape = 'u8[512]{0}', space=vmem, size = 0x400, scoped, tag = 'input window, operand 10, single buffered']
    #allocation17 [shape = 'u8[4096]{0}', space=vmem, size = 0x1000, scoped, tag = 'input window, operand 11, single buffered']
    #allocation18 [shape = 's32[1]{0}', space=sflag, size = 0x4, scoped, tag = 'scoped memory for tpu_custom_call.1']
    #allocation19 [shape = 'u8[512]{0}', space=vmem, size = 0x400, scoped, tag = 'input window, operand 12, single buffered']
    #allocation20 [shape = 'u8[8192]{0}', space=vmem, size = 0x2000, scoped, tag = 'input window, operand 13, single buffered']
    #allocation21 [shape = 's32[1]{0}', space=sflag, size = 0x4, scoped, tag = 'scoped memory for tpu_custom_call.1']
    #allocation22 [shape = 'u8[512]{0}', space=vmem, size = 0x400, scoped, tag = 'input window, operand 14, single buffered']
    #allocation23 [shape = 'u8[512]{0}', space=vmem, size = 0x400, scoped, tag = 'input window, operand 16, single buffered']
    #allocation24 [shape = 's32[1]{0}', space=sflag, size = 0x4, scoped, tag = 'scoped memory for tpu_custom_call.1']
    #allocation25 [shape = 'u8[4096]{0}', space=vmem, size = 0x1000, scoped, tag = 'output window, operand 0']
    %24 = vsyncpa [#allocation3], 0
    %25 = vsyncpa [#allocation6], 0
    %26 = vsyncpa [#allocation9], 0
    %27 = vsyncpa [#allocation12], 0
    %28 = vsyncpa [#allocation15], 0
    %29 = vsyncpa [#allocation18], 0
    %30 = vsyncpa [#allocation21], 0
    %31 = vsyncpa [#allocation24], 0
    %32 = vsyncpa [#allocation4], 0
    %s33 = scalar_lea.sflag [#allocation4], 1
    %34 = vsyncpa %s33, 0
    loop: start=0, step=1, limit=4
    $region2: #{tpu_custom_call.1} parent=1 // loop_pre_header
      _
    $region3: #{tpu_custom_call.1} parent=1 // loop_header
      %s36 = sphi 0, %s40
      %p37 = scmp.ge.s32.totalorder %s36, 4
      %s46 = sphi 0, %s48
      %s49 = sphi 0, %s46
      %s50 = sphi 0, %s49
      %s66 = sphi 0, %s50
      %s70 = sphi 0, %s70
      %s72 = sphi 0, %s70
      %s73 = sphi 0, %s72
      %s87 = sphi 0, %s73
      %s91 = sphi 0, %s91
      %s93 = sphi 0, %s91
      %s94 = sphi 0, %s93
      %s108 = sphi 0, %s94
      %s112 = sphi 0, %s112
      %s114 = sphi 0, %s112
      %s115 = sphi 0, %s114
      %s129 = sphi 0, %s115
      %s133 = sphi 0, %s133
      %s135 = sphi 0, %s133
      %s136 = sphi 0, %s135
      %s150 = sphi 0, %s136
      %s154 = sphi 0, %s154
      %s156 = sphi 0, %s154
      %s157 = sphi 0, %s156
      %s171 = sphi 0, %s157
      %s175 = sphi 0, %s175
      %s177 = sphi 0, %s175
      %s178 = sphi 0, %s177
      %s192 = sphi 0, %s178
      %s196 = sphi 0, %s196
      %s198 = sphi 0, %s196
      %s199 = sphi 0, %s198
      %s213 = sphi 0, %s199
      %s217 = sphi 0, %s217
      %s219 = sphi 0, %s217
      %s220 = sphi 0, %s219
      %s234 = sphi 0, %s220
      %s238 = sphi 0, %s238
      %s240 = sphi 0, %s238
      %s241 = sphi 0, %s240
      %s255 = sphi 0, %s241
      %s259 = sphi 0, %s259
      %s261 = sphi 0, %s259
      %s262 = sphi 0, %s261
      %s276 = sphi 0, %s262
      %s280 = sphi 0, %s280
      %s282 = sphi 0, %s280
      %s283 = sphi 0, %s282
      %s297 = sphi 0, %s283
      %s301 = sphi 0, %s301
      %s303 = sphi 0, %s301
      %s304 = sphi 0, %s303
      %s318 = sphi 0, %s304
      %s322 = sphi 0, %s322
      %s324 = sphi 0, %s322
      %s325 = sphi 0, %s324
      %s339 = sphi 0, %s325
      %s343 = sphi 0, %s343
      %s345 = sphi 0, %s343
      %s346 = sphi 0, %s345
      %s360 = sphi 0, %s346
      %s364 = sphi 0, %s364
      %s366 = sphi 0, %s364
      %s367 = sphi 0, %s366
      %s381 = sphi 0, %s367
      %s385 = sphi 0, %s385
      %s387 = sphi 0, %s385
      %s388 = sphi 0, %s387
      %s402 = sphi 0, %s388
      %s406 = sphi 0, %s406
      %s408 = sphi 0, %s406
      %s409 = sphi 0, %s408
      %s423 = sphi 0, %s409
      %s427 = sphi 0, %s427
      %s429 = sphi 0, %s427
      %s430 = sphi 0, %s429
      %s444 = sphi 0, %s430
      %s450 = sphi 0, %s452
      %s453 = sphi 0, %s450
      %s454 = sphi 0, %s453
      %s470 = sphi 0, %s454
    $region4: #{tpu_custom_call.1} parent=1 // loop_header_branch
      %39 = sbr.rel (%p37) target = $region8
    $region5: #{tpu_custom_call.1} parent=1 // loop_body
      %s41 = ssub.s32 %s36, 1
      %s42 = ssub.s32 %s36, 2
      %s43 = sadd.s32 %s36, 1
      %s44 = ssub.s32 %s36, %s43
      %p45 = scmp.eq.s32.totalorder %s44, 0
      %s47 = sadd.s32 %s46, 1
      %s48 = scalar_select %p45, %s46, %s47
      %p51 = pneg %p45
      %p52 = scmp.eq.s32.totalorder %s36, 1
      %p53 = por %p51, %p52
      %p54 = scmp.ne.s32.totalorder %s46, %s49
      %p55 = scmp.eq.s32.totalorder %s36, 0
      %p56 = por %p54, %p55
      %p57 = scmp.ne.s32.totalorder %s46, %s49
      %p58 = scmp.eq.s32.totalorder %s41, 1
      %p59 = por %p57, %p58
      %p60 = scmp.ne.s32.totalorder %s49, %s50
      %p61 = scmp.eq.s32.totalorder %s41, 0
      %p62 = por %p60, %p61
      %p63 = scmp.ne.s32.totalorder %s49, %s50
      %p64 = scmp.eq.s32.totalorder %s42, 1
      %p65 = por %p63, %p64
      %p67 = scmp.ne.s32.totalorder %s50, %s66
      %p68 = scmp.eq.s32.totalorder %s42, 0
      %p69 = por %p67, %p68
      %s71 = sadd.s32 %s70, 1
      %p74 = scmp.eq.s32.totalorder %s36, 1
      %p75 = scmp.ne.s32.totalorder %s70, %s72
      %p76 = scmp.eq.s32.totalorder %s36, 0
      %p77 = por %p75, %p76
      %p78 = scmp.ne.s32.totalorder %s70, %s72
      %p79 = scmp.eq.s32.totalorder %s41, 1
      %p80 = por %p78, %p79
      %p81 = scmp.ne.s32.totalorder %s72, %s73
      %p82 = scmp.eq.s32.totalorder %s41, 0
      %p83 = por %p81, %p82
      %p84 = scmp.ne.s32.totalorder %s72, %s73
      %p85 = scmp.eq.s32.totalorder %s42, 1
      %p86 = por %p84, %p85
      %p88 = scmp.ne.s32.totalorder %s73, %s87
      %p89 = scmp.eq.s32.totalorder %s42, 0
      %p90 = por %p88, %p89
      %s92 = sadd.s32 %s91, 1
      %p95 = scmp.eq.s32.totalorder %s36, 1
      %p96 = scmp.ne.s32.totalorder %s91, %s93
      %p97 = scmp.eq.s32.totalorder %s36, 0
      %p98 = por %p96, %p97
      %p99 = scmp.ne.s32.totalorder %s91, %s93
      %p100 = scmp.eq.s32.totalorder %s41, 1
      %p101 = por %p99, %p100
      %p102 = scmp.ne.s32.totalorder %s93, %s94
      %p103 = scmp.eq.s32.totalorder %s41, 0
      %p104 = por %p102, %p103
      %p105 = scmp.ne.s32.totalorder %s93, %s94
      %p106 = scmp.eq.s32.totalorder %s42, 1
      %p107 = por %p105, %p106
      %p109 = scmp.ne.s32.totalorder %s94, %s108
      %p110 = scmp.eq.s32.totalorder %s42, 0
      %p111 = por %p109, %p110
      %s113 = sadd.s32 %s112, 1
      %p116 = scmp.eq.s32.totalorder %s36, 1
      %p117 = scmp.ne.s32.totalorder %s112, %s114
      %p118 = scmp.eq.s32.totalorder %s36, 0
      %p119 = por %p117, %p118
      %p120 = scmp.ne.s32.totalorder %s112, %s114
      %p121 = scmp.eq.s32.totalorder %s41, 1
      %p122 = por %p120, %p121
      %p123 = scmp.ne.s32.totalorder %s114, %s115
      %p124 = scmp.eq.s32.totalorder %s41, 0
      %p125 = por %p123, %p124
      %p126 = scmp.ne.s32.totalorder %s114, %s115
      %p127 = scmp.eq.s32.totalorder %s42, 1
      %p128 = por %p126, %p127
      %p130 = scmp.ne.s32.totalorder %s115, %s129
      %p131 = scmp.eq.s32.totalorder %s42, 0
      %p132 = por %p130, %p131
      %s134 = sadd.s32 %s133, 1
      %p137 = scmp.eq.s32.totalorder %s36, 1
      %p138 = scmp.ne.s32.totalorder %s133, %s135
      %p139 = scmp.eq.s32.totalorder %s36, 0
      %p140 = por %p138, %p139
      %p141 = scmp.ne.s32.totalorder %s133, %s135
      %p142 = scmp.eq.s32.totalorder %s41, 1
      %p143 = por %p141, %p142
      %p144 = scmp.ne.s32.totalorder %s135, %s136
      %p145 = scmp.eq.s32.totalorder %s41, 0
      %p146 = por %p144, %p145
      %p147 = scmp.ne.s32.totalorder %s135, %s136
      %p148 = scmp.eq.s32.totalorder %s42, 1
      %p149 = por %p147, %p148
      %p151 = scmp.ne.s32.totalorder %s136, %s150
      %p152 = scmp.eq.s32.totalorder %s42, 0
      %p153 = por %p151, %p152
      %s155 = sadd.s32 %s154, 1
      %p158 = scmp.eq.s32.totalorder %s36, 1
      %p159 = scmp.ne.s32.totalorder %s154, %s156
      %p160 = scmp.eq.s32.totalorder %s36, 0
      %p161 = por %p159, %p160
      %p162 = scmp.ne.s32.totalorder %s154, %s156
      %p163 = scmp.eq.s32.totalorder %s41, 1
      %p164 = por %p162, %p163
      %p165 = scmp.ne.s32.totalorder %s156, %s157
      %p166 = scmp.eq.s32.totalorder %s41, 0
      %p167 = por %p165, %p166
      %p168 = scmp.ne.s32.totalorder %s156, %s157
      %p169 = scmp.eq.s32.totalorder %s42, 1
      %p170 = por %p168, %p169
      %p172 = scmp.ne.s32.totalorder %s157, %s171
      %p173 = scmp.eq.s32.totalorder %s42, 0
      %p174 = por %p172, %p173
      %s176 = sadd.s32 %s175, 1
      %p179 = scmp.eq.s32.totalorder %s36, 1
      %p180 = scmp.ne.s32.totalorder %s175, %s177
      %p181 = scmp.eq.s32.totalorder %s36, 0
      %p182 = por %p180, %p181
      %p183 = scmp.ne.s32.totalorder %s175, %s177
      %p184 = scmp.eq.s32.totalorder %s41, 1
      %p185 = por %p183, %p184
      %p186 = scmp.ne.s32.totalorder %s177, %s178
      %p187 = scmp.eq.s32.totalorder %s41, 0
      %p188 = por %p186, %p187
      %p189 = scmp.ne.s32.totalorder %s177, %s178
      %p190 = scmp.eq.s32.totalorder %s42, 1
      %p191 = por %p189, %p190
      %p193 = scmp.ne.s32.totalorder %s178, %s192
      %p194 = scmp.eq.s32.totalorder %s42, 0
      %p195 = por %p193, %p194
      %s197 = sadd.s32 %s196, 1
      %p200 = scmp.eq.s32.totalorder %s36, 1
      %p201 = scmp.ne.s32.totalorder %s196, %s198
      %p202 = scmp.eq.s32.totalorder %s36, 0
      %p203 = por %p201, %p202
      %p204 = scmp.ne.s32.totalorder %s196, %s198
      %p205 = scmp.eq.s32.totalorder %s41, 1
      %p206 = por %p204, %p205
      %p207 = scmp.ne.s32.totalorder %s198, %s199
      %p208 = scmp.eq.s32.totalorder %s41, 0
      %p209 = por %p207, %p208
      %p210 = scmp.ne.s32.totalorder %s198, %s199
      %p211 = scmp.eq.s32.totalorder %s42, 1
      %p212 = por %p210, %p211
      %p214 = scmp.ne.s32.totalorder %s199, %s213
      %p215 = scmp.eq.s32.totalorder %s42, 0
      %p216 = por %p214, %p215
      %s218 = sadd.s32 %s217, 1
      %p221 = scmp.eq.s32.totalorder %s36, 1
      %p222 = scmp.ne.s32.totalorder %s217, %s219
      %p223 = scmp.eq.s32.totalorder %s36, 0
      %p224 = por %p222, %p223
      %p225 = scmp.ne.s32.totalorder %s217, %s219
      %p226 = scmp.eq.s32.totalorder %s41, 1
      %p227 = por %p225, %p226
      %p228 = scmp.ne.s32.totalorder %s219, %s220
      %p229 = scmp.eq.s32.totalorder %s41, 0
      %p230 = por %p228, %p229
      %p231 = scmp.ne.s32.totalorder %s219, %s220
      %p232 = scmp.eq.s32.totalorder %s42, 1
      %p233 = por %p231, %p232
      %p235 = scmp.ne.s32.totalorder %s220, %s234
      %p236 = scmp.eq.s32.totalorder %s42, 0
      %p237 = por %p235, %p236
      %s239 = sadd.s32 %s238, 1
      %p242 = scmp.eq.s32.totalorder %s36, 1
      %p243 = scmp.ne.s32.totalorder %s238, %s240
      %p244 = scmp.eq.s32.totalorder %s36, 0
      %p245 = por %p243, %p244
      %p246 = scmp.ne.s32.totalorder %s238, %s240
      %p247 = scmp.eq.s32.totalorder %s41, 1
      %p248 = por %p246, %p247
      %p249 = scmp.ne.s32.totalorder %s240, %s241
      %p250 = scmp.eq.s32.totalorder %s41, 0
      %p251 = por %p249, %p250
      %p252 = scmp.ne.s32.totalorder %s240, %s241
      %p253 = scmp.eq.s32.totalorder %s42, 1
      %p254 = por %p252, %p253
      %p256 = scmp.ne.s32.totalorder %s241, %s255
      %p257 = scmp.eq.s32.totalorder %s42, 0
      %p258 = por %p256, %p257
      %s260 = sadd.s32 %s259, 1
      %p263 = scmp.eq.s32.totalorder %s36, 1
      %p264 = scmp.ne.s32.totalorder %s259, %s261
      %p265 = scmp.eq.s32.totalorder %s36, 0
      %p266 = por %p264, %p265
      %p267 = scmp.ne.s32.totalorder %s259, %s261
      %p268 = scmp.eq.s32.totalorder %s41, 1
      %p269 = por %p267, %p268
      %p270 = scmp.ne.s32.totalorder %s261, %s262
      %p271 = scmp.eq.s32.totalorder %s41, 0
      %p272 = por %p270, %p271
      %p273 = scmp.ne.s32.totalorder %s261, %s262
      %p274 = scmp.eq.s32.totalorder %s42, 1
      %p275 = por %p273, %p274
      %p277 = scmp.ne.s32.totalorder %s262, %s276
      %p278 = scmp.eq.s32.totalorder %s42, 0
      %p279 = por %p277, %p278
      %s281 = sadd.s32 %s280, 1
      %p284 = scmp.eq.s32.totalorder %s36, 1
      %p285 = scmp.ne.s32.totalorder %s280, %s282
      %p286 = scmp.eq.s32.totalorder %s36, 0
      %p287 = por %p285, %p286
      %p288 = scmp.ne.s32.totalorder %s280, %s282
      %p289 = scmp.eq.s32.totalorder %s41, 1
      %p290 = por %p288, %p289
      %p291 = scmp.ne.s32.totalorder %s282, %s283
      %p292 = scmp.eq.s32.totalorder %s41, 0
      %p293 = por %p291, %p292
      %p294 = scmp.ne.s32.totalorder %s282, %s283
      %p295 = scmp.eq.s32.totalorder %s42, 1
      %p296 = por %p294, %p295
      %p298 = scmp.ne.s32.totalorder %s283, %s297
      %p299 = scmp.eq.s32.totalorder %s42, 0
      %p300 = por %p298, %p299
      %s302 = sadd.s32 %s301, 1
      %p305 = scmp.eq.s32.totalorder %s36, 1
      %p306 = scmp.ne.s32.totalorder %s301, %s303
      %p307 = scmp.eq.s32.totalorder %s36, 0
      %p308 = por %p306, %p307
      %p309 = scmp.ne.s32.totalorder %s301, %s303
      %p310 = scmp.eq.s32.totalorder %s41, 1
      %p311 = por %p309, %p310
      %p312 = scmp.ne.s32.totalorder %s303, %s304
      %p313 = scmp.eq.s32.totalorder %s41, 0
      %p314 = por %p312, %p313
      %p315 = scmp.ne.s32.totalorder %s303, %s304
      %p316 = scmp.eq.s32.totalorder %s42, 1
      %p317 = por %p315, %p316
      %p319 = scmp.ne.s32.totalorder %s304, %s318
      %p320 = scmp.eq.s32.totalorder %s42, 0
      %p321 = por %p319, %p320
      %s323 = sadd.s32 %s322, 1
      %p326 = scmp.eq.s32.totalorder %s36, 1
      %p327 = scmp.ne.s32.totalorder %s322, %s324
      %p328 = scmp.eq.s32.totalorder %s36, 0
      %p329 = por %p327, %p328
      %p330 = scmp.ne.s32.totalorder %s322, %s324
      %p331 = scmp.eq.s32.totalorder %s41, 1
      %p332 = por %p330, %p331
      %p333 = scmp.ne.s32.totalorder %s324, %s325
      %p334 = scmp.eq.s32.totalorder %s41, 0
      %p335 = por %p333, %p334
      %p336 = scmp.ne.s32.totalorder %s324, %s325
      %p337 = scmp.eq.s32.totalorder %s42, 1
      %p338 = por %p336, %p337
      %p340 = scmp.ne.s32.totalorder %s325, %s339
      %p341 = scmp.eq.s32.totalorder %s42, 0
      %p342 = por %p340, %p341
      %s344 = sadd.s32 %s343, 1
      %p347 = scmp.eq.s32.totalorder %s36, 1
      %p348 = scmp.ne.s32.totalorder %s343, %s345
      %p349 = scmp.eq.s32.totalorder %s36, 0
      %p350 = por %p348, %p349
      %p351 = scmp.ne.s32.totalorder %s343, %s345
      %p352 = scmp.eq.s32.totalorder %s41, 1
      %p353 = por %p351, %p352
      %p354 = scmp.ne.s32.totalorder %s345, %s346
      %p355 = scmp.eq.s32.totalorder %s41, 0
      %p356 = por %p354, %p355
      %p357 = scmp.ne.s32.totalorder %s345, %s346
      %p358 = scmp.eq.s32.totalorder %s42, 1
      %p359 = por %p357, %p358
      %p361 = scmp.ne.s32.totalorder %s346, %s360
      %p362 = scmp.eq.s32.totalorder %s42, 0
      %p363 = por %p361, %p362
      %s365 = sadd.s32 %s364, 1
      %p368 = scmp.eq.s32.totalorder %s36, 1
      %p369 = scmp.ne.s32.totalorder %s364, %s366
      %p370 = scmp.eq.s32.totalorder %s36, 0
      %p371 = por %p369, %p370
      %p372 = scmp.ne.s32.totalorder %s364, %s366
      %p373 = scmp.eq.s32.totalorder %s41, 1
      %p374 = por %p372, %p373
      %p375 = scmp.ne.s32.totalorder %s366, %s367
      %p376 = scmp.eq.s32.totalorder %s41, 0
      %p377 = por %p375, %p376
      %p378 = scmp.ne.s32.totalorder %s366, %s367
      %p379 = scmp.eq.s32.totalorder %s42, 1
      %p380 = por %p378, %p379
      %p382 = scmp.ne.s32.totalorder %s367, %s381
      %p383 = scmp.eq.s32.totalorder %s42, 0
      %p384 = por %p382, %p383
      %s386 = sadd.s32 %s385, 1
      %p389 = scmp.eq.s32.totalorder %s36, 1
      %p390 = scmp.ne.s32.totalorder %s385, %s387
      %p391 = scmp.eq.s32.totalorder %s36, 0
      %p392 = por %p390, %p391
      %p393 = scmp.ne.s32.totalorder %s385, %s387
      %p394 = scmp.eq.s32.totalorder %s41, 1
      %p395 = por %p393, %p394
      %p396 = scmp.ne.s32.totalorder %s387, %s388
      %p397 = scmp.eq.s32.totalorder %s41, 0
      %p398 = por %p396, %p397
      %p399 = scmp.ne.s32.totalorder %s387, %s388
      %p400 = scmp.eq.s32.totalorder %s42, 1
      %p401 = por %p399, %p400
      %p403 = scmp.ne.s32.totalorder %s388, %s402
      %p404 = scmp.eq.s32.totalorder %s42, 0
      %p405 = por %p403, %p404
      %s407 = sadd.s32 %s406, 1
      %p410 = scmp.eq.s32.totalorder %s36, 1
      %p411 = scmp.ne.s32.totalorder %s406, %s408
      %p412 = scmp.eq.s32.totalorder %s36, 0
      %p413 = por %p411, %p412
      %p414 = scmp.ne.s32.totalorder %s406, %s408
      %p415 = scmp.eq.s32.totalorder %s41, 1
      %p416 = por %p414, %p415
      %p417 = scmp.ne.s32.totalorder %s408, %s409
      %p418 = scmp.eq.s32.totalorder %s41, 0
      %p419 = por %p417, %p418
      %p420 = scmp.ne.s32.totalorder %s408, %s409
      %p421 = scmp.eq.s32.totalorder %s42, 1
      %p422 = por %p420, %p421
      %p424 = scmp.ne.s32.totalorder %s409, %s423
      %p425 = scmp.eq.s32.totalorder %s42, 0
      %p426 = por %p424, %p425
      %s428 = sadd.s32 %s427, 1
      %p431 = scmp.eq.s32.totalorder %s36, 1
      %p432 = scmp.ne.s32.totalorder %s427, %s429
      %p433 = scmp.eq.s32.totalorder %s36, 0
      %p434 = por %p432, %p433
      %p435 = scmp.ne.s32.totalorder %s427, %s429
      %p436 = scmp.eq.s32.totalorder %s41, 1
      %p437 = por %p435, %p436
      %p438 = scmp.ne.s32.totalorder %s429, %s430
      %p439 = scmp.eq.s32.totalorder %s41, 0
      %p440 = por %p438, %p439
      %p441 = scmp.ne.s32.totalorder %s429, %s430
      %p442 = scmp.eq.s32.totalorder %s42, 1
      %p443 = por %p441, %p442
      %p445 = scmp.ne.s32.totalorder %s430, %s444
      %p446 = scmp.eq.s32.totalorder %s42, 0
      %p447 = por %p445, %p446
      %s448 = ssub.s32 %s36, %s43
      %p449 = scmp.eq.s32.totalorder %s448, 0
      %s451 = sadd.s32 %s450, 1
      %s452 = scalar_select %p449, %s450, %s451
      %p455 = pneg %p449
      %p456 = scmp.eq.s32.totalorder %s36, 1
      %p457 = por %p455, %p456
      %p458 = scmp.ne.s32.totalorder %s450, %s453
      %p459 = scmp.eq.s32.totalorder %s36, 0
      %p460 = por %p458, %p459
      %p461 = scmp.ne.s32.totalorder %s450, %s453
      %p462 = scmp.eq.s32.totalorder %s41, 1
      %p463 = por %p461, %p462
      %p464 = scmp.ne.s32.totalorder %s453, %s454
      %p465 = scmp.eq.s32.totalorder %s41, 0
      %p466 = por %p464, %p465
      %p467 = scmp.ne.s32.totalorder %s453, %s454
      %p468 = scmp.eq.s32.totalorder %s42, 1
      %p469 = por %p467, %p468
      %p471 = scmp.ne.s32.totalorder %s454, %s470
      %p472 = scmp.eq.s32.totalorder %s42, 0
      %p473 = por %p471, %p472
      %p474 = scmp.le.s32.totalorder 1, %s36
      %p475 = scmp.lt.s32.totalorder %s36, 3
      %p476 = pnand %p474, %p475
      %p477 = pneg %p476
      // Predicated region
      $region9: #{tpu_custom_call.1} parent=5 // pred_check
        _
      $region10: #{tpu_custom_call.1} parent=5 // pred_check_branch
        %479 = sbr.rel (%p476) target = $region12
      $region11: #{tpu_custom_call.1} parent=5 // pred_region
        %s480 = ssub.s32 %s36, 1
        // Predicated region
        $region13: #{tpu_custom_call.1} parent=11 // pred_check
          %p481 = pneg %p83
        $region14: #{tpu_custom_call.1} parent=11 // pred_check_branch
          %483 = sbr.rel (%p481) target = $region16
        $region15: #{tpu_custom_call.1} parent=11 // pred_region
          %485 = vsyncadd [#allocation3], 0
          %s486 = sshll.u32 %s1, 4
          %s487 = int_to_ptr.hbm [resolvable:$true] %s486
          %s488 = sshll.u32 [#allocation2], 4
          %s489 = int_to_ptr.vmem [resolvable:$true] %s488
          %494 = dma.hbm_to_vmem [thread:$0]  %s487, 128, %s489, [#allocation3], 64, 64, 4
        $region16: #{tpu_custom_call.1} parent=11 // pred_fallthru
          _
        // Predicated region
        $region17: #{tpu_custom_call.1} parent=11 // pred_check
          %p495 = pneg %p104
        $region18: #{tpu_custom_call.1} parent=11 // pred_check_branch
          %497 = sbr.rel (%p495) target = $region20
        $region19: #{tpu_custom_call.1} parent=11 // pred_region
          %499 = vsyncadd [#allocation6], 0
          %s501 = sshll.u32 %s2, 4
          %s502 = int_to_ptr.hbm [resolvable:$true] %s501
          %s503 = sshll.u32 [#allocation5], 4
          %s504 = int_to_ptr.vmem [resolvable:$true] %s503
          %506 = dma.hbm_to_vmem [thread:$0]  %s502, 16, %s504, [#allocation6]
        $region20: #{tpu_custom_call.1} parent=11 // pred_fallthru
          _
        // Predicated region
        $region21: #{tpu_custom_call.1} parent=11 // pred_check
          %p507 = pneg %p125
        $region22: #{tpu_custom_call.1} parent=11 // pred_check_branch
          %509 = sbr.rel (%p507) target = $region24
        $region23: #{tpu_custom_call.1} parent=11 // pred_region
          _
        $region24: #{tpu_custom_call.1} parent=11 // pred_fallthru
          _
        // Predicated region
        $region25: #{tpu_custom_call.1} parent=11 // pred_check
          %p510 = pneg %p146
        $region26: #{tpu_custom_call.1} parent=11 // pred_check_branch
          %512 = sbr.rel (%p510) target = $region28
        $region27: #{tpu_custom_call.1} parent=11 // pred_region
          %514 = vsyncadd [#allocation6], 0
          %s516 = sshll.u32 %s4, 4
          %s517 = int_to_ptr.hbm [resolvable:$true] %s516
          %s518 = sshll.u32 [#allocation7], 4
          %s519 = int_to_ptr.vmem [resolvable:$true] %s518
          %521 = dma.hbm_to_vmem [thread:$0]  %s517, 16, %s519, [#allocation6]
        $region28: #{tpu_custom_call.1} parent=11 // pred_fallthru
          _
        // Predicated region
        $region29: #{tpu_custom_call.1} parent=11 // pred_check
          %p522 = pneg %p167
        $region30: #{tpu_custom_call.1} parent=11 // pred_check_branch
          %524 = sbr.rel (%p522) target = $region32
        $region31: #{tpu_custom_call.1} parent=11 // pred_region
          %526 = vsyncadd [#allocation9], 0
          %s528 = sshll.u32 %s5, 4
          %s529 = int_to_ptr.hbm [resolvable:$true] %s528
          %s530 = sshll.u32 [#allocation8], 4
          %s531 = int_to_ptr.vmem [resolvable:$true] %s530
          %533 = dma.hbm_to_vmem [thread:$0]  %s529, 64, %s531, [#allocation9]
        $region32: #{tpu_custom_call.1} parent=11 // pred_fallthru
          _
        // Predicated region
        $region33: #{tpu_custom_call.1} parent=11 // pred_check
          %p534 = pneg %p188
        $region34: #{tpu_custom_call.1} parent=11 // pred_check_branch
          %536 = sbr.rel (%p534) target = $region36
        $region35: #{tpu_custom_call.1} parent=11 // pred_region
          %538 = vsyncadd [#allocation9], 0
          %s540 = sshll.u32 %s6, 4
          %s541 = int_to_ptr.hbm [resolvable:$true] %s540
          %s542 = sshll.u32 [#allocation10], 4
          %s543 = int_to_ptr.vmem [resolvable:$true] %s542
          %545 = dma.hbm_to_vmem [thread:$0]  %s541, 16, %s543, [#allocation9]
        $region36: #{tpu_custom_call.1} parent=11 // pred_fallthru
          _
        // Predicated region
        $region37: #{tpu_custom_call.1} parent=11 // pred_check
          %p546 = pneg %p209
        $region38: #{tpu_custom_call.1} parent=11 // pred_check_branch
          %548 = sbr.rel (%p546) target = $region40
        $region39: #{tpu_custom_call.1} parent=11 // pred_region
          %550 = vsyncadd [#allocation12], 0
          %s551 = sshll.u32 %s7, 4
          %s552 = int_to_ptr.hbm [resolvable:$true] %s551
          %s553 = sshll.u32 [#allocation11], 4
          %s554 = int_to_ptr.vmem [resolvable:$true] %s553
          %559 = dma.hbm_to_vmem [thread:$0]  %s552, 256, %s554, [#allocation12], 128, 128, 8
        $region40: #{tpu_custom_call.1} parent=11 // pred_fallthru
          _
        // Predicated region
        $region41: #{tpu_custom_call.1} parent=11 // pred_check
          %p560 = pneg %p230
        $region42: #{tpu_custom_call.1} parent=11 // pred_check_branch
          %562 = sbr.rel (%p560) target = $region44
        $region43: #{tpu_custom_call.1} parent=11 // pred_region
          %564 = vsyncadd [#allocation12], 0
          %s566 = sshll.u32 %s8, 4
          %s567 = int_to_ptr.hbm [resolvable:$true] %s566
          %s568 = sshll.u32 [#allocation13], 4
          %s569 = int_to_ptr.vmem [resolvable:$true] %s568
          %571 = dma.hbm_to_vmem [thread:$0]  %s567, 16, %s569, [#allocation12]
        $region44: #{tpu_custom_call.1} parent=11 // pred_fallthru
          _
        // Predicated region
        $region45: #{tpu_custom_call.1} parent=11 // pred_check
          %p572 = pneg %p251
        $region46: #{tpu_custom_call.1} parent=11 // pred_check_branch
          %574 = sbr.rel (%p572) target = $region48
        $region47: #{tpu_custom_call.1} parent=11 // pred_region
          %576 = vsyncadd [#allocation15], 0
          %s577 = sshll.u32 %s9, 4
          %s578 = int_to_ptr.hbm [resolvable:$true] %s577
          %s579 = sshll.u32 [#allocation14], 4
          %s580 = int_to_ptr.vmem [resolvable:$true] %s579
          %585 = dma.hbm_to_vmem [thread:$0]  %s578, 256, %s580, [#allocation15], 128, 128, 8
        $region48: #{tpu_custom_call.1} parent=11 // pred_fallthru
          _
        // Predicated region
        $region49: #{tpu_custom_call.1} parent=11 // pred_check
          %p586 = pneg %p272
        $region50: #{tpu_custom_call.1} parent=11 // pred_check_branch
          %588 = sbr.rel (%p586) target = $region52
        $region51: #{tpu_custom_call.1} parent=11 // pred_region
          %590 = vsyncadd [#allocation15], 0
          %s592 = sshll.u32 %s10, 4
          %s593 = int_to_ptr.hbm [resolvable:$true] %s592
          %s594 = sshll.u32 [#allocation16], 4
          %s595 = int_to_ptr.vmem [resolvable:$true] %s594
          %597 = dma.hbm_to_vmem [thread:$0]  %s593, 16, %s595, [#allocation15]
        $region52: #{tpu_custom_call.1} parent=11 // pred_fallthru
          _
        // Predicated region
        $region53: #{tpu_custom_call.1} parent=11 // pred_check
          %p598 = pneg %p293
        $region54: #{tpu_custom_call.1} parent=11 // pred_check_branch
          %600 = sbr.rel (%p598) target = $region56
        $region55: #{tpu_custom_call.1} parent=11 // pred_region
          %602 = vsyncadd [#allocation18], 0
          %s604 = sshll.u32 %s11, 4
          %s605 = int_to_ptr.hbm [resolvable:$true] %s604
          %s606 = sshll.u32 [#allocation17], 4
          %s607 = int_to_ptr.vmem [resolvable:$true] %s606
          %609 = dma.hbm_to_vmem [thread:$0]  %s605, 128, %s607, [#allocation18]
        $region56: #{tpu_custom_call.1} parent=11 // pred_fallthru
          _
        // Predicated region
        $region57: #{tpu_custom_call.1} parent=11 // pred_check
          %p610 = pneg %p314
        $region58: #{tpu_custom_call.1} parent=11 // pred_check_branch
          %612 = sbr.rel (%p610) target = $region60
        $region59: #{tpu_custom_call.1} parent=11 // pred_region
          %614 = vsyncadd [#allocation18], 0
          %s616 = sshll.u32 %s12, 4
          %s617 = int_to_ptr.hbm [resolvable:$true] %s616
          %s618 = sshll.u32 [#allocation19], 4
          %s619 = int_to_ptr.vmem [resolvable:$true] %s618
          %621 = dma.hbm_to_vmem [thread:$0]  %s617, 16, %s619, [#allocation18]
        $region60: #{tpu_custom_call.1} parent=11 // pred_fallthru
          _
        // Predicated region
        $region61: #{tpu_custom_call.1} parent=11 // pred_check
          %p622 = pneg %p335
        $region62: #{tpu_custom_call.1} parent=11 // pred_check_branch
          %624 = sbr.rel (%p622) target = $region64
        $region63: #{tpu_custom_call.1} parent=11 // pred_region
          %626 = vsyncadd [#allocation21], 0
          %s627 = sshll.u32 %s13, 4
          %s628 = int_to_ptr.hbm [resolvable:$true] %s627
          %s629 = sshll.u32 [#allocation20], 4
          %s630 = int_to_ptr.vmem [resolvable:$true] %s629
          %635 = dma.hbm_to_vmem [thread:$0]  %s628, 256, %s630, [#allocation21], 128, 128, 8
        $region64: #{tpu_custom_call.1} parent=11 // pred_fallthru
          _
        // Predicated region
        $region65: #{tpu_custom_call.1} parent=11 // pred_check
          %p636 = pneg %p356
        $region66: #{tpu_custom_call.1} parent=11 // pred_check_branch
          %638 = sbr.rel (%p636) target = $region68
        $region67: #{tpu_custom_call.1} parent=11 // pred_region
          %640 = vsyncadd [#allocation21], 0
          %s642 = sshll.u32 %s14, 4
          %s643 = int_to_ptr.hbm [resolvable:$true] %s642
          %s644 = sshll.u32 [#allocation22], 4
          %s645 = int_to_ptr.vmem [resolvable:$true] %s644
          %647 = dma.hbm_to_vmem [thread:$0]  %s643, 16, %s645, [#allocation21]
        $region68: #{tpu_custom_call.1} parent=11 // pred_fallthru
          _
        // Predicated region
        $region69: #{tpu_custom_call.1} parent=11 // pred_check
          %p648 = pneg %p377
        $region70: #{tpu_custom_call.1} parent=11 // pred_check_branch
          %650 = sbr.rel (%p648) target = $region72
        $region71: #{tpu_custom_call.1} parent=11 // pred_region
          _
        $region72: #{tpu_custom_call.1} parent=11 // pred_fallthru
          _
        // Predicated region
        $region73: #{tpu_custom_call.1} parent=11 // pred_check
          %p651 = pneg %p398
        $region74: #{tpu_custom_call.1} parent=11 // pred_check_branch
          %653 = sbr.rel (%p651) target = $region76
        $region75: #{tpu_custom_call.1} parent=11 // pred_region
          %655 = vsyncadd [#allocation24], 0
          %s657 = sshll.u32 %s16, 4
          %s658 = int_to_ptr.hbm [resolvable:$true] %s657
          %s659 = sshll.u32 [#allocation23], 4
          %s660 = int_to_ptr.vmem [resolvable:$true] %s659
          %662 = dma.hbm_to_vmem [thread:$0]  %s658, 16, %s660, [#allocation24]
        $region76: #{tpu_custom_call.1} parent=11 // pred_fallthru
          _
        // Predicated region
        $region77: #{tpu_custom_call.1} parent=11 // pred_check
          %p663 = pneg %p419
        $region78: #{tpu_custom_call.1} parent=11 // pred_check_branch
          %665 = sbr.rel (%p663) target = $region80
        $region79: #{tpu_custom_call.1} parent=11 // pred_region
          _
        $region80: #{tpu_custom_call.1} parent=11 // pred_fallthru
          _
        // Predicated region
        $region81: #{tpu_custom_call.1} parent=11 // pred_check
          %p666 = pneg %p440
        $region82: #{tpu_custom_call.1} parent=11 // pred_check_branch
          %668 = sbr.rel (%p666) target = $region84
        $region83: #{tpu_custom_call.1} parent=11 // pred_region
          _
        $region84: #{tpu_custom_call.1} parent=11 // pred_fallthru
          _
      $region12: #{tpu_custom_call.1} parent=5 // pred_fallthru
        _
      %p669 = scmp.lt.s32.totalorder %s36, 2
      // Predicated region
      $region85: #{tpu_custom_call.1} parent=5 // pred_check
        %p670 = pneg %p669
      $region86: #{tpu_custom_call.1} parent=5 // pred_check_branch
        %672 = sbr.rel (%p670) target = $region88
      $region87: #{tpu_custom_call.1} parent=5 // pred_region
        // Predicated region
        $region89: #{tpu_custom_call.1} parent=87 // pred_check
          %p673 = pneg %p56
        $region90: #{tpu_custom_call.1} parent=87 // pred_check_branch
          %675 = sbr.rel (%p673) target = $region92
        $region91: #{tpu_custom_call.1} parent=87 // pred_region
          %p676 = scmp.lt.s32.totalorder %s36, 1
          %s677 = scalar_select %p676, %s36, 1
          %s678 = smul.addr %s677, 2
          %s679 = smul.addr %s678, 8
          %s680 = scalar_lea.vmem %s0, %s679
        $region92: #{tpu_custom_call.1} parent=87 // pred_fallthru
          _
      $region88: #{tpu_custom_call.1} parent=5 // pred_fallthru
        _
      %p681 = scmp.le.s32.totalorder 1, %s36
      %p682 = scmp.lt.s32.totalorder %s36, 3
      %p683 = pnand %p681, %p682
      %p684 = pneg %p683
      // Predicated region
      $region93: #{tpu_custom_call.1} parent=5 // pred_check
        _
      $region94: #{tpu_custom_call.1} parent=5 // pred_check_branch
        %686 = sbr.rel (%p683) target = $region96
      $region95: #{tpu_custom_call.1} parent=5 // pred_region
        %s687 = ssub.s32 %s36, 1
        // Predicated region
        $region97: #{tpu_custom_call.1} parent=95 // pred_check
          %p688 = pneg %p83
        $region98: #{tpu_custom_call.1} parent=95 // pred_check_branch
          %690 = sbr.rel (%p688) target = $region100
        $region99: #{tpu_custom_call.1} parent=95 // pred_region
          %692 = dma.done [#allocation3], 128
        $region100: #{tpu_custom_call.1} parent=95 // pred_fallthru
          _
        // Predicated region
        $region101: #{tpu_custom_call.1} parent=95 // pred_check
          %p693 = pneg %p104
        $region102: #{tpu_custom_call.1} parent=95 // pred_check_branch
          %695 = sbr.rel (%p693) target = $region104
        $region103: #{tpu_custom_call.1} parent=95 // pred_region
          %697 = dma.done [#allocation6], 16
        $region104: #{tpu_custom_call.1} parent=95 // pred_fallthru
          _
        // Predicated region
        $region105: #{tpu_custom_call.1} parent=95 // pred_check
          %p698 = pneg %p146
        $region106: #{tpu_custom_call.1} parent=95 // pred_check_branch
          %700 = sbr.rel (%p698) target = $region108
        $region107: #{tpu_custom_call.1} parent=95 // pred_region
          %702 = dma.done [#allocation6], 16
        $region108: #{tpu_custom_call.1} parent=95 // pred_fallthru
          _
        // Predicated region
        $region109: #{tpu_custom_call.1} parent=95 // pred_check
          %p703 = pneg %p167
        $region110: #{tpu_custom_call.1} parent=95 // pred_check_branch
          %705 = sbr.rel (%p703) target = $region112
        $region111: #{tpu_custom_call.1} parent=95 // pred_region
          %707 = dma.done [#allocation9], 64
        $region112: #{tpu_custom_call.1} parent=95 // pred_fallthru
          _
        // Predicated region
        $region113: #{tpu_custom_call.1} parent=95 // pred_check
          %p708 = pneg %p188
        $region114: #{tpu_custom_call.1} parent=95 // pred_check_branch
          %710 = sbr.rel (%p708) target = $region116
        $region115: #{tpu_custom_call.1} parent=95 // pred_region
          %712 = dma.done [#allocation9], 16
        $region116: #{tpu_custom_call.1} parent=95 // pred_fallthru
          _
        // Predicated region
        $region117: #{tpu_custom_call.1} parent=95 // pred_check
          %p713 = pneg %p209
        $region118: #{tpu_custom_call.1} parent=95 // pred_check_branch
          %715 = sbr.rel (%p713) target = $region120
        $region119: #{tpu_custom_call.1} parent=95 // pred_region
          %717 = dma.done [#allocation12], 256
        $region120: #{tpu_custom_call.1} parent=95 // pred_fallthru
          _
        // Predicated region
        $region121: #{tpu_custom_call.1} parent=95 // pred_check
          %p718 = pneg %p230
        $region122: #{tpu_custom_call.1} parent=95 // pred_check_branch
          %720 = sbr.rel (%p718) target = $region124
        $region123: #{tpu_custom_call.1} parent=95 // pred_region
          %722 = dma.done [#allocation12], 16
        $region124: #{tpu_custom_call.1} parent=95 // pred_fallthru
          _
        // Predicated region
        $region125: #{tpu_custom_call.1} parent=95 // pred_check
          %p723 = pneg %p251
        $region126: #{tpu_custom_call.1} parent=95 // pred_check_branch
          %725 = sbr.rel (%p723) target = $region128
        $region127: #{tpu_custom_call.1} parent=95 // pred_region
          %727 = dma.done [#allocation15], 256
        $region128: #{tpu_custom_call.1} parent=95 // pred_fallthru
          _
        // Predicated region
        $region129: #{tpu_custom_call.1} parent=95 // pred_check
          %p728 = pneg %p272
        $region130: #{tpu_custom_call.1} parent=95 // pred_check_branch
          %730 = sbr.rel (%p728) target = $region132
        $region131: #{tpu_custom_call.1} parent=95 // pred_region
          %732 = dma.done [#allocation15], 16
        $region132: #{tpu_custom_call.1} parent=95 // pred_fallthru
          _
        // Predicated region
        $region133: #{tpu_custom_call.1} parent=95 // pred_check
          %p733 = pneg %p293
        $region134: #{tpu_custom_call.1} parent=95 // pred_check_branch
          %735 = sbr.rel (%p733) target = $region136
        $region135: #{tpu_custom_call.1} parent=95 // pred_region
          %737 = dma.done [#allocation18], 128
        $region136: #{tpu_custom_call.1} parent=95 // pred_fallthru
          _
        // Predicated region
        $region137: #{tpu_custom_call.1} parent=95 // pred_check
          %p738 = pneg %p314
        $region138: #{tpu_custom_call.1} parent=95 // pred_check_branch
          %740 = sbr.rel (%p738) target = $region140
        $region139: #{tpu_custom_call.1} parent=95 // pred_region
          %742 = dma.done [#allocation18], 16
        $region140: #{tpu_custom_call.1} parent=95 // pred_fallthru
          _
        // Predicated region
        $region141: #{tpu_custom_call.1} parent=95 // pred_check
          %p743 = pneg %p335
        $region142: #{tpu_custom_call.1} parent=95 // pred_check_branch
          %745 = sbr.rel (%p743) target = $region144
        $region143: #{tpu_custom_call.1} parent=95 // pred_region
          %747 = dma.done [#allocation21], 256
        $region144: #{tpu_custom_call.1} parent=95 // pred_fallthru
          _
        // Predicated region
        $region145: #{tpu_custom_call.1} parent=95 // pred_check
          %p748 = pneg %p356
        $region146: #{tpu_custom_call.1} parent=95 // pred_check_branch
          %750 = sbr.rel (%p748) target = $region148
        $region147: #{tpu_custom_call.1} parent=95 // pred_region
          %752 = dma.done [#allocation21], 16
        $region148: #{tpu_custom_call.1} parent=95 // pred_fallthru
          _
        // Predicated region
        $region149: #{tpu_custom_call.1} parent=95 // pred_check
          %p753 = pneg %p398
        $region150: #{tpu_custom_call.1} parent=95 // pred_check_branch
          %755 = sbr.rel (%p753) target = $region152
        $region151: #{tpu_custom_call.1} parent=95 // pred_region
          %757 = dma.done [#allocation24], 16
        $region152: #{tpu_custom_call.1} parent=95 // pred_fallthru
          _
        %p758 = scmp.lt.s32.totalorder %s41, 1
        %s759 = scalar_select %p758, %s41, 1
        %s760 = smul.addr %s759, 2
        %s761 = smul.addr %s760, 8
        %s762 = scalar_lea.vmem %s0, %s761
        %p763 = pneg %p62
        %p764 = pneg %p59
        %p765 = pneg %p83
        %p766 = pneg %p80
        %p767 = pneg %p104
        %p768 = pneg %p101
        %p769 = pneg %p125
        %p770 = pneg %p122
        %p771 = pneg %p146
        %p772 = pneg %p143
        %p773 = pneg %p167
        %p774 = pneg %p164
        %p775 = pneg %p188
        %p776 = pneg %p185
        %p777 = pneg %p209
        %p778 = pneg %p206
        %p779 = pneg %p230
        %p780 = pneg %p227
        %p781 = pneg %p251
        %p782 = pneg %p248
        %p783 = pneg %p272
        %p784 = pneg %p269
        %p785 = pneg %p293
        %p786 = pneg %p290
        %p787 = pneg %p314
        %p788 = pneg %p311
        %p789 = pneg %p335
        %p790 = pneg %p332
        %p791 = pneg %p356
        %p792 = pneg %p353
        %p793 = pneg %p377
        %p794 = pneg %p374
        %p795 = pneg %p398
        %p796 = pneg %p395
        %p797 = pneg %p419
        %p798 = pneg %p416
        %p799 = pneg %p440
        %p800 = pneg %p437
        %p801 = pneg %p466
        %p802 = pneg %p463
        %s803 = sand.u32 %s453, 1
        %s804 = scalar_lea.sflag [#allocation4], %s803
        %s805 = sand.u32 %s453, 1
        %s806 = smul.addr %s805, 4
        %s807 = scalar_lea.vmem [#allocation25], %s806
        %p808 = scmp.lt.s32.totalorder %s41, 1
        %s809 = scalar_select %p808, %s41, 1
        %s810 = smul.addr %s809, 2
        %s811 = smul.addr %s810, 8
        %s812 = scalar_lea.vmem %s0, %s811
        %v813 = vld [vmem:[%s812] sm:$0xff]
        %v814 = vld [vmem:[%s812 + $0x8] sm:$0xff]
        %v815 = vld [vmem:[#allocation2] sm:$0xf]
        %s816 = scalar_lea.vmem [#allocation2], 4
        %v817 = vld [vmem:[%s816] sm:$0xf]
        %v818 = vld [vmem:[%s3] sm:$0xff]
        %s819 = scalar_lea.vmem %s3, 8
        %v820 = vld [vmem:[%s819] sm:$0xff]
        %v821 = vld [vmem:[#allocation8] sm:$0xf]
        %v822 = vld [vmem:[#allocation5] sm:$0x1]
        %v823 = vld [vmem:[#allocation7] sm:$0x1]
        %v824 = vld [vmem:[#allocation10] sm:$0x1]
        %v825 = vlaneseq
        %v826 = vshrl.u32 %v825, 7
        %v827 = vlaneseq
        %v828 = vand.u32 %v827, 127
        %v829 = vmul.u32 %v826, 2
        %vm830 = vcmp.eq.s32.totalorder %v828, %v829
        %v831 = vsel %vm830, 1, 0
        %v832 = vcvt.s32.f32 %v831
        %vm833 = vcmask 130048
        %v835 = vsel %vm833, %v832, 0
        %837 = vmatpush.msra.mxu0 0.0
        %838 = vmatpush.msra.mxu0 0.0
        %839 = vmatpush.msra.mxu0 0.0
        %840 = vmatpush.msra.mxu0 0.0
        %841 = vmatpush.msra.mxu0 0.0
        %842 = vmatpush.msra.mxu0 0.0
        %843 = vmatpush.msra.mxu0 0.0
        %844 = vmatpush.msra.mxu0 0.0
        %845 = vmatpush.msra.mxu0 0.0
        %846 = vmatpush.msra.mxu0 0.0
        %847 = vmatpush.msra.mxu0 0.0
        %848 = vmatpush.msra.mxu0 0.0
        %849 = vmatpush.msra.mxu0 0.0
        %850 = vmatpush.msra.mxu0 0.0
        %851 = vmatpush.msra.mxu0 %v814
        %852 = vmatpush.msra.mxu0 %v813
        %853 = vmatmul.f32.gmra.mxu0 %v835
        %v854 = vpop.f32.mrf.mxu0
        %v855 = vadd.f32 0.0, %v854
        %856 = vdwg.mxu0
        %v857 = vadd.s32 %v829, 1
        %vm858 = vcmp.eq.s32.totalorder %v828, %v857
        %v859 = vsel %vm858, 1, 0
        %v860 = vcvt.s32.f32 %v859
        %v862 = vsel %vm833, %v860, 0
        %864 = vmatpush.msra.mxu0 0.0
        %865 = vmatpush.msra.mxu0 0.0
        %866 = vmatpush.msra.mxu0 0.0
        %867 = vmatpush.msra.mxu0 0.0
        %868 = vmatpush.msra.mxu0 0.0
        %869 = vmatpush.msra.mxu0 0.0
        %870 = vmatpush.msra.mxu0 0.0
        %871 = vmatpush.msra.mxu0 0.0
        %872 = vmatpush.msra.mxu0 0.0
        %873 = vmatpush.msra.mxu0 0.0
        %874 = vmatpush.msra.mxu0 0.0
        %875 = vmatpush.msra.mxu0 0.0
        %876 = vmatpush.msra.mxu0 0.0
        %877 = vmatpush.msra.mxu0 0.0
        %878 = vmatpush.msra.mxu0 %v814
        %879 = vmatpush.msra.mxu0 %v813
        %880 = vmatmul.f32.gmra.mxu0 %v862
        %v881 = vpop.f32.mrf.mxu0
        %v882 = vadd.f32 0.0, %v881
        %883 = vdwg.mxu0
        %vm884 = vcmask 31744
        %v886 = vsel %vm884, %v882, 0
        %vm888 = vcmask 1043456
        %v890 = vsel %vm888, %v817, 0
        %892 = vmatpush.msra.mxu0 0.0
        %893 = vmatpush.msra.mxu0 0.0
        %894 = vmatpush.msra.mxu0 0.0
        %895 = vmatpush.msra.mxu0 0.0
        %896 = vmatpush.msra.mxu0 0.0
        %897 = vmatpush.msra.mxu0 0.0
        %898 = vmatpush.msra.mxu0 0.0
        %899 = vmatpush.msra.mxu0 0.0
        %900 = vmatpush.msra.mxu0 0.0
        %901 = vmatpush.msra.mxu0 0.0
        %902 = vmatpush.msra.mxu0 0.0
        %903 = vmatpush.msra.mxu0 0.0
        %904 = vmatpush.msra.mxu0 0.0
        %905 = vmatpush.msra.mxu0 0.0
        %906 = vmatpush.msra.mxu0 0.0
        %907 = vmatpush.msra.mxu0 %v890
        %908 = vmatmul.f32.gmra.mxu0 %v886
        %v909 = vpop.f32.mrf.mxu0
        %v910 = vadd.f32 0.0, %v909
        %911 = vdwg.mxu0
        %v913 = vsel %vm884, %v855, 0
        %v916 = vsel %vm888, %v815, 0
        %918 = vmatpush.msra.mxu0 0.0
        %919 = vmatpush.msra.mxu0 0.0
        %920 = vmatpush.msra.mxu0 0.0
        %921 = vmatpush.msra.mxu0 0.0
        %922 = vmatpush.msra.mxu0 0.0
        %923 = vmatpush.msra.mxu0 0.0
        %924 = vmatpush.msra.mxu0 0.0
        %925 = vmatpush.msra.mxu0 0.0
        %926 = vmatpush.msra.mxu0 0.0
        %927 = vmatpush.msra.mxu0 0.0
        %928 = vmatpush.msra.mxu0 0.0
        %929 = vmatpush.msra.mxu0 0.0
        %930 = vmatpush.msra.mxu0 0.0
        %931 = vmatpush.msra.mxu0 0.0
        %932 = vmatpush.msra.mxu0 0.0
        %933 = vmatpush.msra.mxu0 %v916
        %934 = vmatmul.f32.gmra.mxu0 %v913
        %v935 = vpop.f32.mrf.mxu0
        %v936 = vadd.f32 %v910, %v935
        %937 = vdwg.mxu0
        %v939 = vperm.slane %v822, 0
        %v941 = vadd.f32 %v936, %v939
        %v942 = vmax.f32 %v941, 0.0
        %v944 = vperm.slane %v824, 0
        %v947 = vsel %vm888, %v821, 0
        %949 = vmatpush.msra.mxu0 0.0
        %950 = vmatpush.msra.mxu0 0.0
        %951 = vmatpush.msra.mxu0 0.0
        %952 = vmatpush.msra.mxu0 0.0
        %953 = vmatpush.msra.mxu0 0.0
        %954 = vmatpush.msra.mxu0 0.0
        %955 = vmatpush.msra.mxu0 0.0
        %956 = vmatpush.msra.mxu0 0.0
        %957 = vmatpush.msra.mxu0 0.0
        %958 = vmatpush.msra.mxu0 0.0
        %959 = vmatpush.msra.mxu0 0.0
        %960 = vmatpush.msra.mxu0 0.0
        %961 = vmatpush.msra.mxu0 0.0
        %962 = vmatpush.msra.mxu0 0.0
        %963 = vmatpush.msra.mxu0 0.0
        %964 = vmatpush.msra.mxu0 %v947
        %965 = vmatmul.f32.gmra.mxu0 %v913
        %v966 = vpop.f32.mrf.mxu0
        %v967 = vadd.f32 %v944, %v966
        %968 = vdwg.mxu0
        %v969 = vmax.f32 %v967, 0.0
        %v970 = vadd.s32 %v826, 1
        %vm971 = vcmp.eq.s32.totalorder %v828, %v970
        %v972 = vsel %vm971, 1, 0
        %v973 = vcvt.s32.f32 %v972
        %vm974 = vcmask 64512
        %v976 = vsel %vm974, %v973, 0
        %978 = vmatpush.msra.mxu0 0.0
        %979 = vmatpush.msra.mxu0 0.0
        %980 = vmatpush.msra.mxu0 0.0
        %981 = vmatpush.msra.mxu0 0.0
        %982 = vmatpush.msra.mxu0 0.0
        %983 = vmatpush.msra.mxu0 0.0
        %984 = vmatpush.msra.mxu0 0.0
        %985 = vmatpush.msra.mxu0 0.0
        %986 = vmatpush.msra.mxu0 0.0
        %987 = vmatpush.msra.mxu0 0.0
        %988 = vmatpush.msra.mxu0 0.0
        %989 = vmatpush.msra.mxu0 0.0
        %990 = vmatpush.msra.mxu0 0.0
        %991 = vmatpush.msra.mxu0 0.0
        %992 = vmatpush.msra.mxu0 0.0
        %993 = vmatpush.msra.mxu0 %v942
        %994 = vmatmul.f32.gmra.mxu0 %v976
        %v995 = vpop.f32.mrf.mxu0
        %v996 = vadd.f32 0.0, %v995
        %997 = vdwg.mxu0
        %v999 = vsel %vm974, %v996, 0
        %1001 = vmatpush.msra.mxu0 0.0
        %1002 = vmatpush.msra.mxu0 0.0
        %1003 = vmatpush.msra.mxu0 0.0
        %1004 = vmatpush.msra.mxu0 0.0
        %1005 = vmatpush.msra.mxu0 0.0
        %1006 = vmatpush.msra.mxu0 0.0
        %1007 = vmatpush.msra.mxu0 0.0
        %1008 = vmatpush.msra.mxu0 0.0
        %1009 = vmatpush.msra.mxu0 0.0
        %1010 = vmatpush.msra.mxu0 0.0
        %1011 = vmatpush.msra.mxu0 0.0
        %1012 = vmatpush.msra.mxu0 0.0
        %1013 = vmatpush.msra.mxu0 0.0
        %1014 = vmatpush.msra.mxu0 0.0
        %1015 = vmatpush.msra.mxu0 0.0
        %1016 = vmatpush.msra.mxu0 %v820
        %1017 = vmatmul.f32.gmra.mxu0 %v999
        %v1018 = vpop.f32.mrf.mxu0
        %v1019 = vadd.f32 0.0, %v1018
        %1020 = vdwg.mxu0
        %v1022 = vsel %vm974, %v942, 0
        %1024 = vmatpush.msra.mxu0 0.0
        %1025 = vmatpush.msra.mxu0 0.0
        %1026 = vmatpush.msra.mxu0 0.0
        %1027 = vmatpush.msra.mxu0 0.0
        %1028 = vmatpush.msra.mxu0 0.0
        %1029 = vmatpush.msra.mxu0 0.0
        %1030 = vmatpush.msra.mxu0 0.0
        %1031 = vmatpush.msra.mxu0 0.0
        %1032 = vmatpush.msra.mxu0 0.0
        %1033 = vmatpush.msra.mxu0 0.0
        %1034 = vmatpush.msra.mxu0 0.0
        %1035 = vmatpush.msra.mxu0 0.0
        %1036 = vmatpush.msra.mxu0 0.0
        %1037 = vmatpush.msra.mxu0 0.0
        %1038 = vmatpush.msra.mxu0 0.0
        %1039 = vmatpush.msra.mxu0 %v818
        %1040 = vmatmul.f32.gmra.mxu0 %v1022
        %v1041 = vpop.f32.mrf.mxu0
        %v1042 = vadd.f32 %v1019, %v1041
        %1043 = vdwg.mxu0
        %v1045 = vperm.slane %v823, 0
        %v1047 = vadd.f32 %v1042, %v1045
        %v1048 = vadd.f32 %v1047, %v969
        %v1049 = vmax.f32 %v1048, 0.0
        %v1050 = vld [vmem:[#allocation11] sm:$0xff]
        %s1051 = scalar_lea.vmem [#allocation11], 8
        %v1052 = vld [vmem:[%s1051] sm:$0xff]
        %v1053 = vld [vmem:[#allocation14] sm:$0xff]
        %s1054 = scalar_lea.vmem [#allocation14], 8
        %v1055 = vld [vmem:[%s1054] sm:$0xff]
        %v1056 = vld [vmem:[#allocation17] sm:$0xff]
        %v1057 = vld [vmem:[#allocation13] sm:$0x1]
        %v1058 = vld [vmem:[#allocation16] sm:$0x1]
        %v1059 = vld [vmem:[#allocation19] sm:$0x1]
        %v1060 = vadd.s32 %v826, 4294967295
        %vm1061 = vcmp.eq.s32.totalorder %v828, %v1060
        %v1062 = vsel %vm1061, 1, 0
        %v1063 = vcvt.s32.f32 %v1062
        %v1065 = vsel %vm974, %v1063, 0
        %1067 = vmatpush.msra.mxu0 0.0
        %1068 = vmatpush.msra.mxu0 0.0
        %1069 = vmatpush.msra.mxu0 0.0
        %1070 = vmatpush.msra.mxu0 0.0
        %1071 = vmatpush.msra.mxu0 0.0
        %1072 = vmatpush.msra.mxu0 0.0
        %1073 = vmatpush.msra.mxu0 0.0
        %1074 = vmatpush.msra.mxu0 0.0
        %1075 = vmatpush.msra.mxu0 0.0
        %1076 = vmatpush.msra.mxu0 0.0
        %1077 = vmatpush.msra.mxu0 0.0
        %1078 = vmatpush.msra.mxu0 0.0
        %1079 = vmatpush.msra.mxu0 0.0
        %1080 = vmatpush.msra.mxu0 0.0
        %1081 = vmatpush.msra.mxu0 0.0
        %1082 = vmatpush.msra.mxu0 %v1049
        %1083 = vmatmul.f32.gmra.mxu0 %v1065
        %v1084 = vpop.f32.mrf.mxu0
        %v1085 = vadd.f32 0.0, %v1084
        %1086 = vdwg.mxu0
        %1087 = vmatpush.msra.mxu0 0.0
        %1088 = vmatpush.msra.mxu0 0.0
        %1089 = vmatpush.msra.mxu0 0.0
        %1090 = vmatpush.msra.mxu0 0.0
        %1091 = vmatpush.msra.mxu0 0.0
        %1092 = vmatpush.msra.mxu0 0.0
        %1093 = vmatpush.msra.mxu0 0.0
        %1094 = vmatpush.msra.mxu0 0.0
        %1095 = vmatpush.msra.mxu0 0.0
        %1096 = vmatpush.msra.mxu0 0.0
        %1097 = vmatpush.msra.mxu0 0.0
        %1098 = vmatpush.msra.mxu0 0.0
        %1099 = vmatpush.msra.mxu0 0.0
        %1100 = vmatpush.msra.mxu0 0.0
        %1101 = vmatpush.msra.mxu0 0.0
        %1102 = vmatpush.msra.mxu0 %v1049
        %1103 = vmatmul.f32.gmra.mxu0 %v976
        %v1104 = vpop.f32.mrf.mxu0
        %v1105 = vadd.f32 0.0, %v1104
        %1106 = vdwg.mxu0
        %v1108 = vsel %vm974, %v1105, 0
        %1110 = vmatpush.msra.mxu0 0.0
        %1111 = vmatpush.msra.mxu0 0.0
        %1112 = vmatpush.msra.mxu0 0.0
        %1113 = vmatpush.msra.mxu0 0.0
        %1114 = vmatpush.msra.mxu0 0.0
        %1115 = vmatpush.msra.mxu0 0.0
        %1116 = vmatpush.msra.mxu0 0.0
        %1117 = vmatpush.msra.mxu0 0.0
        %1118 = vmatpush.msra.mxu0 0.0
        %1119 = vmatpush.msra.mxu0 0.0
        %1120 = vmatpush.msra.mxu0 0.0
        %1121 = vmatpush.msra.mxu0 0.0
        %1122 = vmatpush.msra.mxu0 0.0
        %1123 = vmatpush.msra.mxu0 0.0
        %1124 = vmatpush.msra.mxu0 0.0
        %1125 = vmatpush.msra.mxu0 %v1052
        %1126 = vmatmul.f32.gmra.mxu0 %v1108
        %v1127 = vpop.f32.mrf.mxu0
        %v1128 = vadd.f32 0.0, %v1127
        %1129 = vdwg.mxu0
        %v1131 = vsel %vm974, %v1085, 0
        %1133 = vmatpush.msra.mxu0 0.0
        %1134 = vmatpush.msra.mxu0 0.0
        %1135 = vmatpush.msra.mxu0 0.0
        %1136 = vmatpush.msra.mxu0 0.0
        %1137 = vmatpush.msra.mxu0 0.0
        %1138 = vmatpush.msra.mxu0 0.0
        %1139 = vmatpush.msra.mxu0 0.0
        %1140 = vmatpush.msra.mxu0 0.0
        %1141 = vmatpush.msra.mxu0 0.0
        %1142 = vmatpush.msra.mxu0 0.0
        %1143 = vmatpush.msra.mxu0 0.0
        %1144 = vmatpush.msra.mxu0 0.0
        %1145 = vmatpush.msra.mxu0 0.0
        %1146 = vmatpush.msra.mxu0 0.0
        %1147 = vmatpush.msra.mxu0 0.0
        %1148 = vmatpush.msra.mxu0 %v1050
        %1149 = vmatmul.f32.gmra.mxu0 %v1131
        %v1150 = vpop.f32.mrf.mxu0
        %v1151 = vadd.f32 %v1128, %v1150
        %1152 = vdwg.mxu0
        %v1154 = vperm.slane %v1057, 0
        %v1156 = vadd.f32 %v1151, %v1154
        %v1157 = vmax.f32 %v1156, 0.0
        %v1159 = vperm.slane %v1059, 0
        %v1162 = vsel %vm974, %v1049, 0
        %1164 = vmatpush.msra.mxu0 0.0
        %1165 = vmatpush.msra.mxu0 0.0
        %1166 = vmatpush.msra.mxu0 0.0
        %1167 = vmatpush.msra.mxu0 0.0
        %1168 = vmatpush.msra.mxu0 0.0
        %1169 = vmatpush.msra.mxu0 0.0
        %1170 = vmatpush.msra.mxu0 0.0
        %1171 = vmatpush.msra.mxu0 0.0
        %1172 = vmatpush.msra.mxu0 0.0
        %1173 = vmatpush.msra.mxu0 0.0
        %1174 = vmatpush.msra.mxu0 0.0
        %1175 = vmatpush.msra.mxu0 0.0
        %1176 = vmatpush.msra.mxu0 0.0
        %1177 = vmatpush.msra.mxu0 0.0
        %1178 = vmatpush.msra.mxu0 0.0
        %1179 = vmatpush.msra.mxu0 %v1056
        %1180 = vmatmul.f32.gmra.mxu0 %v1162
        %v1181 = vpop.f32.mrf.mxu0
        %v1182 = vadd.f32 %v1159, %v1181
        %1183 = vdwg.mxu0
        %v1184 = vmax.f32 %v1182, 0.0
        %1185 = vmatpush.msra.mxu0 0.0
        %1186 = vmatpush.msra.mxu0 0.0
        %1187 = vmatpush.msra.mxu0 0.0
        %1188 = vmatpush.msra.mxu0 0.0
        %1189 = vmatpush.msra.mxu0 0.0
        %1190 = vmatpush.msra.mxu0 0.0
        %1191 = vmatpush.msra.mxu0 0.0
        %1192 = vmatpush.msra.mxu0 0.0
        %1193 = vmatpush.msra.mxu0 0.0
        %1194 = vmatpush.msra.mxu0 0.0
        %1195 = vmatpush.msra.mxu0 0.0
        %1196 = vmatpush.msra.mxu0 0.0
        %1197 = vmatpush.msra.mxu0 0.0
        %1198 = vmatpush.msra.mxu0 0.0
        %1199 = vmatpush.msra.mxu0 0.0
        %1200 = vmatpush.msra.mxu0 %v1157
        %1201 = vmatmul.f32.gmra.mxu0 %v1065
        %v1202 = vpop.f32.mrf.mxu0
        %v1203 = vadd.f32 0.0, %v1202
        %1204 = vdwg.mxu0
        %1205 = vmatpush.msra.mxu0 0.0
        %1206 = vmatpush.msra.mxu0 0.0
        %1207 = vmatpush.msra.mxu0 0.0
        %1208 = vmatpush.msra.mxu0 0.0
        %1209 = vmatpush.msra.mxu0 0.0
        %1210 = vmatpush.msra.mxu0 0.0
        %1211 = vmatpush.msra.mxu0 0.0
        %1212 = vmatpush.msra.mxu0 0.0
        %1213 = vmatpush.msra.mxu0 0.0
        %1214 = vmatpush.msra.mxu0 0.0
        %1215 = vmatpush.msra.mxu0 0.0
        %1216 = vmatpush.msra.mxu0 0.0
        %1217 = vmatpush.msra.mxu0 0.0
        %1218 = vmatpush.msra.mxu0 0.0
        %1219 = vmatpush.msra.mxu0 0.0
        %1220 = vmatpush.msra.mxu0 %v1157
        %1221 = vmatmul.f32.gmra.mxu0 %v976
        %v1222 = vpop.f32.mrf.mxu0
        %v1223 = vadd.f32 0.0, %v1222
        %1224 = vdwg.mxu0
        %v1226 = vsel %vm974, %v1223, 0
        %1228 = vmatpush.msra.mxu0 0.0
        %1229 = vmatpush.msra.mxu0 0.0
        %1230 = vmatpush.msra.mxu0 0.0
        %1231 = vmatpush.msra.mxu0 0.0
        %1232 = vmatpush.msra.mxu0 0.0
        %1233 = vmatpush.msra.mxu0 0.0
        %1234 = vmatpush.msra.mxu0 0.0
        %1235 = vmatpush.msra.mxu0 0.0
        %1236 = vmatpush.msra.mxu0 0.0
        %1237 = vmatpush.msra.mxu0 0.0
        %1238 = vmatpush.msra.mxu0 0.0
        %1239 = vmatpush.msra.mxu0 0.0
        %1240 = vmatpush.msra.mxu0 0.0
        %1241 = vmatpush.msra.mxu0 0.0
        %1242 = vmatpush.msra.mxu0 0.0
        %1243 = vmatpush.msra.mxu0 %v1055
        %1244 = vmatmul.f32.gmra.mxu0 %v1226
        %v1245 = vpop.f32.mrf.mxu0
        %v1246 = vadd.f32 0.0, %v1245
        %1247 = vdwg.mxu0
        %v1249 = vsel %vm974, %v1203, 0
        %1251 = vmatpush.msra.mxu0 0.0
        %1252 = vmatpush.msra.mxu0 0.0
        %1253 = vmatpush.msra.mxu0 0.0
        %1254 = vmatpush.msra.mxu0 0.0
        %1255 = vmatpush.msra.mxu0 0.0
        %1256 = vmatpush.msra.mxu0 0.0
        %1257 = vmatpush.msra.mxu0 0.0
        %1258 = vmatpush.msra.mxu0 0.0
        %1259 = vmatpush.msra.mxu0 0.0
        %1260 = vmatpush.msra.mxu0 0.0
        %1261 = vmatpush.msra.mxu0 0.0
        %1262 = vmatpush.msra.mxu0 0.0
        %1263 = vmatpush.msra.mxu0 0.0
        %1264 = vmatpush.msra.mxu0 0.0
        %1265 = vmatpush.msra.mxu0 0.0
        %1266 = vmatpush.msra.mxu0 %v1053
        %1267 = vmatmul.f32.gmra.mxu0 %v1249
        %v1268 = vpop.f32.mrf.mxu0
        %v1269 = vadd.f32 %v1246, %v1268
        %1270 = vdwg.mxu0
        %v1272 = vperm.slane %v1058, 0
        %v1274 = vadd.f32 %v1269, %v1272
        %v1275 = vadd.f32 %v1274, %v1184
        %v1276 = vmax.f32 %v1275, 0.0
        %v1277 = vld [vmem:[#allocation20] sm:$0xff]
        %s1278 = scalar_lea.vmem [#allocation20], 8
        %v1279 = vld [vmem:[%s1278] sm:$0xff]
        %v1280 = vld [vmem:[%s15] sm:$0xff]
        %v1281 = vld [vmem:[%s15 + $0x8] sm:$0xff]
        %s1282 = scalar_lea.vmem %s15, 16
        %v1283 = vld [vmem:[%s1282] sm:$0xff]
        %v1284 = vld [vmem:[%s1282 + $0x8] sm:$0xff]
        %v1285 = vld [vmem:[%s17] sm:$0xff]
        %v1286 = vld [vmem:[#allocation22] sm:$0x1]
        %v1287 = vld [vmem:[#allocation23] sm:$0x1]
        %v1288 = vld [vmem:[%s18] sm:$0x1]
        %v1289 = vsel %vm974, %v832, 0
        %1291 = vmatpush.msra.mxu0 0.0
        %1292 = vmatpush.msra.mxu0 0.0
        %1293 = vmatpush.msra.mxu0 0.0
        %1294 = vmatpush.msra.mxu0 0.0
        %1295 = vmatpush.msra.mxu0 0.0
        %1296 = vmatpush.msra.mxu0 0.0
        %1297 = vmatpush.msra.mxu0 0.0
        %1298 = vmatpush.msra.mxu0 0.0
        %1299 = vmatpush.msra.mxu0 0.0
        %1300 = vmatpush.msra.mxu0 0.0
        %1301 = vmatpush.msra.mxu0 0.0
        %1302 = vmatpush.msra.mxu0 0.0
        %1303 = vmatpush.msra.mxu0 0.0
        %1304 = vmatpush.msra.mxu0 0.0
        %1305 = vmatpush.msra.mxu0 0.0
        %1306 = vmatpush.msra.mxu0 %v1276
        %1307 = vmatmul.f32.gmra.mxu0 %v1289
        %v1308 = vpop.f32.mrf.mxu0
        %v1309 = vadd.f32 0.0, %v1308
        %1310 = vdwg.mxu0
        %v1311 = vsel %vm974, %v860, 0
        %1313 = vmatpush.msra.mxu0 0.0
        %1314 = vmatpush.msra.mxu0 0.0
        %1315 = vmatpush.msra.mxu0 0.0
        %1316 = vmatpush.msra.mxu0 0.0
        %1317 = vmatpush.msra.mxu0 0.0
        %1318 = vmatpush.msra.mxu0 0.0
        %1319 = vmatpush.msra.mxu0 0.0
        %1320 = vmatpush.msra.mxu0 0.0
        %1321 = vmatpush.msra.mxu0 0.0
        %1322 = vmatpush.msra.mxu0 0.0
        %1323 = vmatpush.msra.mxu0 0.0
        %1324 = vmatpush.msra.mxu0 0.0
        %1325 = vmatpush.msra.mxu0 0.0
        %1326 = vmatpush.msra.mxu0 0.0
        %1327 = vmatpush.msra.mxu0 0.0
        %1328 = vmatpush.msra.mxu0 %v1276
        %1329 = vmatmul.f32.gmra.mxu0 %v1311
        %v1330 = vpop.f32.mrf.mxu0
        %v1331 = vadd.f32 0.0, %v1330
        %1332 = vdwg.mxu0
        %v1334 = vsel %vm974, %v1331, 0
        %1336 = vmatpush.msra.mxu0 0.0
        %1337 = vmatpush.msra.mxu0 0.0
        %1338 = vmatpush.msra.mxu0 0.0
        %1339 = vmatpush.msra.mxu0 0.0
        %1340 = vmatpush.msra.mxu0 0.0
        %1341 = vmatpush.msra.mxu0 0.0
        %1342 = vmatpush.msra.mxu0 0.0
        %1343 = vmatpush.msra.mxu0 0.0
        %1344 = vmatpush.msra.mxu0 0.0
        %1345 = vmatpush.msra.mxu0 0.0
        %1346 = vmatpush.msra.mxu0 0.0
        %1347 = vmatpush.msra.mxu0 0.0
        %1348 = vmatpush.msra.mxu0 0.0
        %1349 = vmatpush.msra.mxu0 0.0
        %1350 = vmatpush.msra.mxu0 0.0
        %1351 = vmatpush.msra.mxu0 %v1279
        %1352 = vmatmul.f32.gmra.mxu0 %v1334
        %v1353 = vpop.f32.mrf.mxu0
        %v1354 = vadd.f32 0.0, %v1353
        %1355 = vdwg.mxu0
        %v1357 = vsel %vm974, %v1309, 0
        %1359 = vmatpush.msra.mxu0 0.0
        %1360 = vmatpush.msra.mxu0 0.0
        %1361 = vmatpush.msra.mxu0 0.0
        %1362 = vmatpush.msra.mxu0 0.0
        %1363 = vmatpush.msra.mxu0 0.0
        %1364 = vmatpush.msra.mxu0 0.0
        %1365 = vmatpush.msra.mxu0 0.0
        %1366 = vmatpush.msra.mxu0 0.0
        %1367 = vmatpush.msra.mxu0 0.0
        %1368 = vmatpush.msra.mxu0 0.0
        %1369 = vmatpush.msra.mxu0 0.0
        %1370 = vmatpush.msra.mxu0 0.0
        %1371 = vmatpush.msra.mxu0 0.0
        %1372 = vmatpush.msra.mxu0 0.0
        %1373 = vmatpush.msra.mxu0 0.0
        %1374 = vmatpush.msra.mxu0 %v1277
        %1375 = vmatmul.f32.gmra.mxu0 %v1357
        %v1376 = vpop.f32.mrf.mxu0
        %v1377 = vadd.f32 %v1354, %v1376
        %1378 = vdwg.mxu0
        %v1380 = vperm.slane %v1286, 0
        %v1382 = vadd.f32 %v1377, %v1380
        %v1383 = vmax.f32 %v1382, 0.0
        %v1385 = vperm.slane %v1288, 0
        %1387 = vmatpush.msra.mxu0 0.0
        %1388 = vmatpush.msra.mxu0 0.0
        %1389 = vmatpush.msra.mxu0 0.0
        %1390 = vmatpush.msra.mxu0 0.0
        %1391 = vmatpush.msra.mxu0 0.0
        %1392 = vmatpush.msra.mxu0 0.0
        %1393 = vmatpush.msra.mxu0 0.0
        %1394 = vmatpush.msra.mxu0 0.0
        %1395 = vmatpush.msra.mxu0 0.0
        %1396 = vmatpush.msra.mxu0 0.0
        %1397 = vmatpush.msra.mxu0 0.0
        %1398 = vmatpush.msra.mxu0 0.0
        %1399 = vmatpush.msra.mxu0 0.0
        %1400 = vmatpush.msra.mxu0 0.0
        %1401 = vmatpush.msra.mxu0 0.0
        %1402 = vmatpush.msra.mxu0 %v1285
        %1403 = vmatmul.f32.gmra.mxu0 %v1357
        %v1404 = vpop.f32.mrf.mxu0
        %v1405 = vadd.f32 %v1385, %v1404
        %1406 = vdwg.mxu0
        %v1407 = vmax.f32 %v1405, 0.0
        %v1408 = vadd.s32 %v826, 4294967294
        %vm1409 = vcmp.eq.s32.totalorder %v828, %v1408
        %v1410 = vsel %vm1409, 1, 0
        %v1411 = vcvt.s32.f32 %v1410
        %v1413 = vsel %vm884, %v1411, 0
        %v1416 = vsel %vm888, %v1383, 0
        %1418 = vmatpush.msra.mxu0 0.0
        %1419 = vmatpush.msra.mxu0 0.0
        %1420 = vmatpush.msra.mxu0 0.0
        %1421 = vmatpush.msra.mxu0 0.0
        %1422 = vmatpush.msra.mxu0 0.0
        %1423 = vmatpush.msra.mxu0 0.0
        %1424 = vmatpush.msra.mxu0 0.0
        %1425 = vmatpush.msra.mxu0 0.0
        %1426 = vmatpush.msra.mxu0 0.0
        %1427 = vmatpush.msra.mxu0 0.0
        %1428 = vmatpush.msra.mxu0 0.0
        %1429 = vmatpush.msra.mxu0 0.0
        %1430 = vmatpush.msra.mxu0 0.0
        %1431 = vmatpush.msra.mxu0 0.0
        %1432 = vmatpush.msra.mxu0 0.0
        %1433 = vmatpush.msra.mxu0 %v1416
        %1434 = vmatmul.f32.gmra.mxu0 %v1413
        %v1435 = vpop.f32.mrf.mxu0
        %v1436 = vadd.f32 0.0, %v1435
        %1437 = vdwg.mxu0
        %v1438 = vadd.s32 %v826, 2
        %vm1439 = vcmp.eq.s32.totalorder %v828, %v1438
        %v1440 = vsel %vm1439, 1, 0
        %v1441 = vcvt.s32.f32 %v1440
        %v1443 = vsel %vm884, %v1441, 0
        %1445 = vmatpush.msra.mxu0 0.0
        %1446 = vmatpush.msra.mxu0 0.0
        %1447 = vmatpush.msra.mxu0 0.0
        %1448 = vmatpush.msra.mxu0 0.0
        %1449 = vmatpush.msra.mxu0 0.0
        %1450 = vmatpush.msra.mxu0 0.0
        %1451 = vmatpush.msra.mxu0 0.0
        %1452 = vmatpush.msra.mxu0 0.0
        %1453 = vmatpush.msra.mxu0 0.0
        %1454 = vmatpush.msra.mxu0 0.0
        %1455 = vmatpush.msra.mxu0 0.0
        %1456 = vmatpush.msra.mxu0 0.0
        %1457 = vmatpush.msra.mxu0 0.0
        %1458 = vmatpush.msra.mxu0 0.0
        %1459 = vmatpush.msra.mxu0 0.0
        %1460 = vmatpush.msra.mxu0 %v1416
        %1461 = vmatmul.f32.gmra.mxu0 %v1443
        %v1462 = vpop.f32.mrf.mxu0
        %v1463 = vadd.f32 0.0, %v1462
        %1464 = vdwg.mxu0
        %v1466 = vsel %vm833, %v1463, 0
        %1468 = vmatpush.msra.mxu0 0.0
        %1469 = vmatpush.msra.mxu0 0.0
        %1470 = vmatpush.msra.mxu0 0.0
        %1471 = vmatpush.msra.mxu0 0.0
        %1472 = vmatpush.msra.mxu0 0.0
        %1473 = vmatpush.msra.mxu0 0.0
        %1474 = vmatpush.msra.mxu0 0.0
        %1475 = vmatpush.msra.mxu0 0.0
        %1476 = vmatpush.msra.mxu0 0.0
        %1477 = vmatpush.msra.mxu0 0.0
        %1478 = vmatpush.msra.mxu0 0.0
        %1479 = vmatpush.msra.mxu0 0.0
        %1480 = vmatpush.msra.mxu0 0.0
        %1481 = vmatpush.msra.mxu0 0.0
        %1482 = vmatpush.msra.mxu0 %v1284
        %1483 = vmatpush.msra.mxu0 %v1283
        %1484 = vmatmul.f32.gmra.mxu0 %v1466
        %v1485 = vpop.f32.mrf.mxu0
        %v1486 = vadd.f32 0.0, %v1485
        %1487 = vdwg.mxu0
        %v1489 = vsel %vm833, %v1436, 0
        %1491 = vmatpush.msra.mxu0 0.0
        %1492 = vmatpush.msra.mxu0 0.0
        %1493 = vmatpush.msra.mxu0 0.0
        %1494 = vmatpush.msra.mxu0 0.0
        %1495 = vmatpush.msra.mxu0 0.0
        %1496 = vmatpush.msra.mxu0 0.0
        %1497 = vmatpush.msra.mxu0 0.0
        %1498 = vmatpush.msra.mxu0 0.0
        %1499 = vmatpush.msra.mxu0 0.0
        %1500 = vmatpush.msra.mxu0 0.0
        %1501 = vmatpush.msra.mxu0 0.0
        %1502 = vmatpush.msra.mxu0 0.0
        %1503 = vmatpush.msra.mxu0 0.0
        %1504 = vmatpush.msra.mxu0 0.0
        %1505 = vmatpush.msra.mxu0 %v1281
        %1506 = vmatpush.msra.mxu0 %v1280
        %1507 = vmatmul.f32.gmra.mxu0 %v1489
        %v1508 = vpop.f32.mrf.mxu0
        %v1509 = vadd.f32 %v1486, %v1508
        %1510 = vdwg.mxu0
        %v1512 = vperm.slane %v1287, 0
        %v1514 = vadd.f32 %v1509, %v1512
        %v1515 = vadd.f32 %v1514, %v1407
        %v1516 = vmax.f32 %v1515, 0.0
        %vm1517 = vcmask 125952
        %1518 = vst.msk [vmem:[%s807] sm:$0xf] %vm1517, %v1516
        %s1519 = sand.u32 %s453, 1
        %s1520 = scalar_lea.sflag [#allocation4], %s1519
        %s1521 = sand.u32 %s453, 1
        %s1522 = smul.addr %s1521, 4
        %s1523 = scalar_lea.vmem [#allocation25], %s1522
        // Predicated region
        $region153: #{tpu_custom_call.1} parent=95 // pred_check
          %p1524 = pneg %p463
        $region154: #{tpu_custom_call.1} parent=95 // pred_check_branch
          %1526 = sbr.rel (%p1524) target = $region156
        $region155: #{tpu_custom_call.1} parent=95 // pred_region
          %1528 = vsyncadd %s1520, 0
          %s1529 = smul.addr %s41, 4
          %s1530 = scalar_lea.hbm %s19, %s1529
          %s1532 = sshll.u32 %s1523, 4
          %s1533 = int_to_ptr.vmem [resolvable:$true] %s1532
          %s1534 = sshll.u32 %s1530, 4
          %s1535 = int_to_ptr.hbm [resolvable:$true] %s1534
          %1537 = dma.vmem_to_hbm [thread:$0]  %s1533, 64, %s1535, %s1520
        $region156: #{tpu_custom_call.1} parent=95 // pred_fallthru
          _
      $region96: #{tpu_custom_call.1} parent=5 // pred_fallthru
        _
      %p1538 = scmp.le.s32.totalorder 2, %s36
      // Predicated region
      $region157: #{tpu_custom_call.1} parent=5 // pred_check
        %p1539 = pneg %p1538
      $region158: #{tpu_custom_call.1} parent=5 // pred_check_branch
        %1541 = sbr.rel (%p1539) target = $region160
      $region159: #{tpu_custom_call.1} parent=5 // pred_region
        %s1542 = ssub.s32 %s36, 2
        // Predicated region
        $region161: #{tpu_custom_call.1} parent=159 // pred_check
          %p1543 = pneg %p469
        $region162: #{tpu_custom_call.1} parent=159 // pred_check_branch
          %1545 = sbr.rel (%p1543) target = $region164
        $region163: #{tpu_custom_call.1} parent=159 // pred_region
          %s1546 = sand.u32 %s454, 1
          %s1547 = scalar_lea.sflag [#allocation4], %s1546
          %s1548 = sand.u32 %s454, 1
          %s1549 = smul.addr %s1548, 4
          %s1550 = scalar_lea.vmem [#allocation25], %s1549
          %1552 = dma.done %s1547, 64
        $region164: #{tpu_custom_call.1} parent=159 // pred_fallthru
          _
      $region160: #{tpu_custom_call.1} parent=5 // pred_fallthru
        _
    $region6: #{tpu_custom_call.1} parent=1 // loop_footer
      %s40 = sadd.s32 1, %s36
    $region7: #{tpu_custom_call.1} parent=1 // loop_footer_branch
      %35 = sbr.rel target = $region3
    $region8: #{tpu_custom_call.1} parent=1 // loop_exit
      _
    %1553 = vsyncpa [#allocation3], 1
    %s1554 = scalar_lea.sflag [#allocation3], 1
    %1555 = vsyncpa %s1554, 1
    %1556 = vsyncpa [#allocation6], 1
    %1557 = vsyncpa [#allocation9], 1
    %1558 = vsyncpa [#allocation12], 1
    %1559 = vsyncpa [#allocation15], 1
    %1560 = vsyncpa [#allocation18], 1
    %1561 = vsyncpa [#allocation21], 1
    %1562 = vsyncpa [#allocation24], 1
    %1563 = vsyncpa [#allocation4], 1
    %s1564 = scalar_lea.sflag [#allocation4], 1
    %1565 = vsyncpa %s1564, 1

</llo_original>
